<compile_context>
chip_gen: v7x
topology: tpu7x:2x2x1
jax: 0.10.0
libtpu: 0.0.40
codegen_flags: <defaults>
</compile_context>

<pallas_src>
import functools
import math

import jax
import jax.numpy as jnp
from jax.experimental import pallas as pl
from jax.experimental.pallas import tpu as pltpu

BERT_DIM = 768  # dimension of the (synthetic) title encodings


def _cap_vmem(nbytes):
    # Keep the scoped-VMEM request within every chip's physical VMEM (v7x: 64 MiB).
    return int(min(max(nbytes, 1 << 20), 64 * 1024 * 1024))


# ----------------------------------------------------------------------------
# Kernels
# ----------------------------------------------------------------------------
def _layernorm(x, gamma, beta, eps):
    mu = jnp.mean(x, axis=-1, keepdims=True)
    var = jnp.mean((x - mu) ** 2, axis=-1, keepdims=True)
    return (x - mu) * jax.lax.rsqrt(var + eps) * gamma + beta


def encoder_stack_kernel(seq_ref, qk_ref, v0_ref, tb_ref,
                         qkvw_ref, qkvb_ref, wo_ref, bo_ref, ln1_ref,
                         w1_ref, b1_ref, w2_ref, b2_ref, ln2_ref,
                         o_ref, x_sc, bias_sc, *, n_heads, eps):
    # TODO(synk): the reference `Encoder` class is not provided in the source;
    # a standard post-LN transformer block is used, with the module's (q, k, v)
    # inputs feeding attention Q/K/V on layer 0 (later layers are
    # self-attention on the running hidden state) and time_scores used as an
    # additive attention bias over keys.
    layer = pl.program_id(1)
    last = pl.num_programs(1) - 1

    @pl.when(layer == 0)
    def _():
        # Activation becomes resident for the whole layer loop of this tile.
        x_sc[...] = qk_ref[...]
        # Build the additive (pad + causal) mask in-kernel and fold in the
        # time-score key bias; cached once per batch tile (layer-invariant).
        seq = seq_ref[...]                                   # [B, L] int32
        L = seq.shape[1]
        row = jax.lax.broadcasted_iota(jnp.int32, (L, L), 0)
        col = jax.lax.broadcasted_iota(jnp.int32, (L, L), 1)
        ok = jnp.logical_and((col <= row)[None, :, :], (seq != 0)[:, None, :])
        bias_sc[...] = (jnp.where(ok, 0.0, -10000.0)
                        + tb_ref[...][:, None, :])           # [B, L, L]

    x3 = x_sc[...]                                           # [B, L, D] f32
    B, L, D = x3.shape
    dh = D // n_heads
    x2 = x3.reshape(B * L, D)
    xb = x2.astype(jnp.bfloat16)

    # V's input: module v on layer 0, running hidden state afterwards.
    v2 = jnp.where(layer == 0, v0_ref[...], x3).reshape(B * L, D)

    # fused QKV projection; 1/sqrt(dh) is pre-folded into the Q weights/bias
    w3 = qkvw_ref[0]                                         # [3, D, D] bf16
    b3 = qkvb_ref[0]                                         # [3, D]    f32
    Q = jnp.dot(xb, w3[0], preferred_element_type=jnp.float32) + b3[0:1, :]
    K = jnp.dot(xb, w3[1], preferred_element_type=jnp.float32) + b3[1:2, :]
    V = jnp.dot(v2.astype(jnp.bfloat16), w3[2],
                preferred_element_type=jnp.float32) + b3[2:3, :]
    Q3 = Q.reshape(B, L, D).astype(jnp.bfloat16)
    K3 = K.reshape(B, L, D).astype(jnp.bfloat16)
    V3 = V.reshape(B, L, D).astype(jnp.bfloat16)

    bias = bias_sc[...]                                      # [B, L, L] f32

    # Per-head attention (bf16 MXU operands, f32 accumulation / softmax).
    ctxs = []
    for h in range(n_heads):                                 # static head loop
        sl = slice(h * dh, (h + 1) * dh)
        s = jnp.einsum('bld,bmd->blm', Q3[:, :, sl], K3[:, :, sl],
                       preferred_element_type=jnp.float32)
        s = s + bias
        s = s - jnp.max(s, axis=-1, keepdims=True)
        p = jnp.exp(s)
        p = p * pl.reciprocal(jnp.sum(p, axis=-1, keepdims=True), approx=True)
        ctxs.append(jnp.einsum('blm,bmd->bld', p.astype(jnp.bfloat16),
                               V3[:, :, sl],
                               preferred_element_type=jnp.float32))
    ctx = jnp.concatenate(ctxs, axis=-1).reshape(B * L, D)   # full-D context

    # Single full-K output projection (uses all MXU contraction rows).
    attn = jnp.dot(ctx.astype(jnp.bfloat16), wo_ref[0],
                   preferred_element_type=jnp.float32) + bo_ref[0]

    ln1 = ln1_ref[0]
    x1 = _layernorm(x2 + attn, ln1[0:1, :], ln1[1:2, :], eps)

    h1 = jnp.maximum(
        jnp.dot(x1.astype(jnp.bfloat16), w1_ref[0],
                preferred_element_type=jnp.float32) + b1_ref[0], 0.0)
    h2 = jnp.dot(h1.astype(jnp.bfloat16), w2_ref[0],
                 preferred_element_type=jnp.float32) + b2_ref[0]
    ln2 = ln2_ref[0]
    out3 = _layernorm(x1 + h2, ln2[0:1, :], ln2[1:2, :], eps).reshape(B, L, D)

    x_sc[...] = out3                                         # stays resident

    @pl.when(layer == last)
    def _():
        o_ref[...] = out3.astype(o_ref.dtype)


def gated_fusion_kernel(cls_ref, traw_ref, linw_ref, linb_ref, gw_ref, gb_ref,
                        o_ref):
    cls2 = cls_ref[...]                                      # [T, D] f32
    # linear_layer: 768 -> D (surrogate for BERT title embeddings), bf16 stream
    title = jnp.dot(traw_ref[...], linw_ref[...],
                    preferred_element_type=jnp.float32) + linb_ref[...]
    gw = gw_ref[...]                                         # [2, D]: (cls, title)
    logit = (jnp.sum(cls2 * gw[0:1, :], axis=-1, keepdims=True)
             + jnp.sum(title * gw[1:2, :], axis=-1, keepdims=True)
             + gb_ref[...])                                  # [T, 1]
    g = jax.nn.sigmoid(logit)
    o_ref[...] = (g * cls2 + (1.0 - g) * title).astype(o_ref.dtype)


# ----------------------------------------------------------------------------
# Pallas wrappers
# ----------------------------------------------------------------------------
def encoder_stack(item_seq, qk, v0, tbias, pk, n_heads, eps, *, batch_tile=None):
    """Runs all encoder layers for one path in a single pallas_call."""
    B, L, D = qk.shape
    tb = B if batch_tile is None else batch_tile
    assert B % tb == 0
    n_layers = pk['qkv_w'].shape[0]
    I = pk['w1'].shape[2]

    kernel = functools.partial(encoder_stack_kernel, n_heads=n_heads, eps=eps)
    inv2 = lambda b, l: (b, 0)        # batch-tiled, layer-invariant
    inv3 = lambda b, l: (b, 0, 0)
    per3 = lambda b, l: (l, 0, 0)     # per-layer weights
    per4 = lambda b, l: (l, 0, 0, 0)

    # Resident-VMEM budget: double-buffered invariant inputs + per-layer bf16
    # weights + output block + scratch + generous slack for temporaries.
    act = tb * L * D * 4
    inv_b = 2 * (tb * L * 4 + 2 * act + tb * L * 4)
    wts_b = 2 * ((3 * D * D + D * D + D * I + I * D) * 2
                 + (3 * D + D + 2 * D + I + D + 2 * D) * 4)
    scr_b = act + tb * L * L * 4
    tmp_b = 2 * tb * L * (4 * D + 2 * L + I) * 4
    vmem_budget = _cap_vmem(inv_b + wts_b + 2 * act + scr_b + tmp_b + (2 << 20))

    return pl.pallas_call(
        kernel,
        out_shape=jax.ShapeDtypeStruct((B, L, D), jnp.float32),
        grid=(B // tb, n_layers),
        in_specs=[
            pl.BlockSpec((tb, L), inv2),                 # item_seq (mask source)
            pl.BlockSpec((tb, L, D), inv3),              # layer-0 q(=k) input
            pl.BlockSpec((tb, L, D), inv3),              # layer-0 v input
            pl.BlockSpec((tb, L), inv2),                 # time-score key bias
            pl.BlockSpec((1, 3, D, D), per4),            # qkv_w  (bf16)
            pl.BlockSpec((1, 3, D), per3),               # qkv_b
            pl.BlockSpec((1, D, D), per3),               # wo     (bf16)
            pl.BlockSpec((1, 1, D), per3),               # bo
            pl.BlockSpec((1, 2, D), per3),               # ln1 (gamma, beta)
            pl.BlockSpec((1, D, I), per3),               # w1     (bf16)
            pl.BlockSpec((1, 1, I), per3),               # b1
            pl.BlockSpec((1, I, D), per3),               # w2     (bf16)
            pl.BlockSpec((1, 1, D), per3),               # b2
            pl.BlockSpec((1, 2, D), per3),               # ln2
        ],
        out_specs=pl.BlockSpec((tb, L, D), inv3),        # revisited; written on last layer
        scratch_shapes=[pltpu.VMEM((tb, L, D), jnp.float32),   # resident activation
                        pltpu.VMEM((tb, L, L), jnp.float32)],  # cached mask+time bias
        compiler_params=pltpu.CompilerParams(
            dimension_semantics=("parallel", "arbitrary"),
            vmem_limit_bytes=vmem_budget),
    )(item_seq, qk, v0, tbias,
      pk['qkv_w'], pk['qkv_b'], pk['wo'], pk['bo'], pk['ln1'],
      pk['w1'], pk['b1'], pk['w2'], pk['b2'], pk['ln2'])


def _pick_row_tile(rows):
    if rows <= 256:
        return rows
    for t in (256, 128, 64, 32, 16, 8):
        if rows % t == 0:
            return t
    return rows


def gated_fusion(cls_emb, title_raw, lin_w, lin_b, gate_w, gate_b):
    """Row-tiled gated fusion: [R, D] cls + [R, 768] bf16 titles -> [R, D]."""
    R, D = cls_emb.shape
    F = title_raw.shape[1]
    tr = _pick_row_tile(R)
    vmem_budget = _cap_vmem(2 * (tr * D * 4 + tr * F * 2) + F * D * 2
                            + 2 * tr * D * 4 + 4 * tr * D * 4 + (2 << 20))
    return pl.pallas_call(
        gated_fusion_kernel,
        out_shape=jax.ShapeDtypeStruct((R, D), jnp.float32),
        grid=(R // tr,),
        in_specs=[
            pl.BlockSpec((tr, D), lambda r: (r, 0)),     # cls embeddings (f32)
            pl.BlockSpec((tr, F), lambda r: (r, 0)),     # raw titles (bf16)
            pl.BlockSpec((F, D), lambda r: (0, 0)),      # linear_layer weight (bf16)
            pl.BlockSpec((1, D), lambda r: (0, 0)),      # linear_layer bias
            pl.BlockSpec((2, D), lambda r: (0, 0)),      # gate weights (cls,title)
            pl.BlockSpec((1, 1), lambda r: (0, 0)),      # gate bias
        ],
        out_specs=pl.BlockSpec((tr, D), lambda r: (r, 0)),
        compiler_params=pltpu.CompilerParams(
            dimension_semantics=("parallel",),
            vmem_limit_bytes=vmem_budget),
    )(cls_emb, title_raw, lin_w, lin_b, gate_w, gate_b)


# ----------------------------------------------------------------------------
# Glue (plain JAX) — tiny ops; XLA fuses them for free
# ----------------------------------------------------------------------------
def normalize_time_scores(time_seq):
    # mu_a = 1, mu_b = 30 (matches the reference: avg over raw t, min/max over all)
    t = time_seq.astype(jnp.float32)
    tp = jnp.where((t <= 1.0) | (t >= 30.0), jnp.zeros_like(t), t)
    avg = jnp.mean(t, axis=1, keepdims=True)
    tdp = tp / (avg + 1e-8)
    mn = jnp.min(tdp, axis=1, keepdims=True)
    mx = jnp.max(tdp, axis=1, keepdims=True)
    return (tdp - mn) / (mx - mn + 1e-8)


def gather_indexes(output, gather_index):
    idx = gather_index.astype(jnp.int32)[:, None, None]
    return jnp.take_along_axis(output, idx, axis=1)[:, 0, :]


def time_model_forward(params, user, item_seq, time_seq, item_seq_len, cfg):
    del user  # user embedding is defined in __init__ but unused in forward
    B, L = item_seq.shape
    D = cfg['hidden_size']
    item_seq = item_seq.astype(jnp.int32)

    # item-level path -------------------------------------------------------
    books_emb = jnp.take(params['book_emb'], item_seq, axis=0)            # [B, L, D]
    pos_emb = jnp.broadcast_to(params['pos_emb'][None, :L, :], (B, L, D))
    time_scores = normalize_time_scores(time_seq)                         # [B, L]
    item_features = books_emb + pos_emb

    item_out = encoder_stack(item_seq, item_features, books_emb, time_scores,
                             params['item_packed'], cfg['n_heads'],
                             cfg['layer_norm_eps'])
    item_out = gather_indexes(item_out, item_seq_len - 1)                 # [B, D]

    # feature-level path ----------------------------------------------------
    # TODO(synk): book_to_category / book_to_title come from a CSV + BERT in
    # the original; here category = book_id % (n_cls+1) and title encodings
    # are a deterministic synthetic [n_items+1, 768] bf16 table.
    cat_ids = item_seq % (cfg['n_book_classification'] + 1)
    cls_emb = jnp.take(params['cls_emb'], cat_ids, axis=0)                # [B, L, D]
    title_raw = jnp.take(params['title_table'], item_seq, axis=0)         # [B, L, 768] bf16
    feature_emb = gated_fusion(cls_emb.reshape(B * L, D),
                               title_raw.reshape(B * L, BERT_DIM),
                               params['lin_w'], params['lin_b'],
                               params['gate_w'], params['gate_b'])
    feature_emb = feature_emb.reshape(B, L, D)

    zero_bias = jnp.zeros((B, L), jnp.float32)
    feat_out = encoder_stack(item_seq, feature_emb, feature_emb, zero_bias,
                             params['feat_packed'], cfg['n_heads'],
                             cfg['layer_norm_eps'])
    feat_out = gather_indexes(feat_out, item_seq_len - 1)                 # [B, D]

    # fuse: tiny [B, 2D] x [2D, D] -> plain JAX
    fused = jnp.concatenate([item_out, feat_out], axis=-1)
    return jnp.dot(fused, params['fuse_w']) + params['fuse_b']            # [B, D]


# ----------------------------------------------------------------------------
# Deterministic parameter initialization + packing for the fused kernel
# ----------------------------------------------------------------------------
def pack_encoder_layers(layers, n_heads):
    """Stack per-layer params along a leading axis; split QKV; fold 1/sqrt(dh)
    into the Q projection; cast matmul weights to bf16."""
    D = layers[0]['qkv_w'].shape[0]
    n_layers = len(layers)
    dh = D // n_heads
    scale = 1.0 / math.sqrt(dh)

    def stack(key):
        return jnp.stack([lyr[key] for lyr in layers], axis=0)

    qkv_w = stack('qkv_w').reshape(n_layers, D, 3, D).transpose(0, 2, 1, 3)  # [nL,3,D,D]
    qkv_b = stack('qkv_b').reshape(n_layers, 3, D)
    sw = jnp.array([scale, 1.0, 1.0], jnp.float32)
    qkv_w = qkv_w * sw[None, :, None, None]
    qkv_b = qkv_b * sw[None, :, None]
    return dict(
        qkv_w=qkv_w.astype(jnp.bfloat16),
        qkv_b=qkv_b.astype(jnp.float32),
        wo=stack('wo').astype(jnp.bfloat16),
        bo=stack('bo'),
        ln1=stack('ln1'),
        w1=stack('w1').astype(jnp.bfloat16),
        b1=stack('b1'),
        w2=stack('w2').astype(jnp.bfloat16),
        b2=stack('b2'),
        ln2=stack('ln2'),
    )


def init_params(key, cfg):
    D = cfg['hidden_size']
    I = cfg['inner_size']
    std = cfg['initializer_range']
    n_items = cfg['n_items']
    n_cls = cfg['n_book_classification']

    keys = jax.random.split(key, 64)
    kit = iter(keys)

    def nrm(shape):
        return (std * jax.random.normal(next(kit), shape)).astype(jnp.float32)

    def ln_pair():
        return jnp.concatenate(
            [jnp.ones((1, D), jnp.float32), jnp.zeros((1, D), jnp.float32)], axis=0)

    def layer():
        return dict(
            qkv_w=nrm((D, 3 * D)), qkv_b=jnp.zeros((1, 3 * D), jnp.float32),
            wo=nrm((D, D)), bo=jnp.zeros((1, D), jnp.float32),
            ln1=ln_pair(),
            w1=nrm((D, I)), b1=jnp.zeros((1, I), jnp.float32),
            w2=nrm((I, D)), b2=jnp.zeros((1, D), jnp.float32),
            ln2=ln_pair(),
        )

    item_layers = [layer() for _ in range(cfg['n_layers'])]
    feat_layers = [layer() for _ in range(cfg['n_layers'])]

    book_emb = nrm((n_items + 1, D)).at[0].set(0.0)   # padding_idx=0
    params = dict(
        book_emb=book_emb,
        cls_emb=nrm((n_cls + 1, D)),
        pos_emb=nrm((cfg['max_seq_length'], D)),
        title_table=jax.random.normal(
            next(kit), (n_items + 1, BERT_DIM)).astype(jnp.bfloat16),
        lin_w=nrm((BERT_DIM, D)).astype(jnp.bfloat16),
        lin_b=jnp.zeros((1, D), jnp.float32),
        gate_w=nrm((1, 2 * D)).reshape(2, D),         # rows: (cls, title) gate weights
        gate_b=jnp.zeros((1, 1), jnp.float32),
        fuse_w=nrm((2 * D, D)), fuse_b=jnp.zeros((1, D), jnp.float32),
        item_packed=pack_encoder_layers(item_layers, cfg['n_heads']),
        feat_packed=pack_encoder_layers(feat_layers, cfg['n_heads']),
    )
    return params


# ----------------------------------------------------------------------------
if __name__ == "__main__":
    cfg = dict(
        n_layers=2, n_heads=2, hidden_size=32, inner_size=64,
        dropout_prob=0.1,          # dropout: eval mode -> identity
        n_items=50, n_users=10, n_book_classification=7,
        max_seq_length=8, initializer_range=0.02, layer_norm_eps=1e-12,
    )
    B, L = 2, cfg['max_seq_length']

    root = jax.random.PRNGKey(0)
    k_param, k_items, k_time = jax.random.split(root, 3)
    params = init_params(k_param, cfg)

    user = jnp.arange(B, dtype=jnp.int32) + 1
    item_seq_len = jnp.array([L, L - 3], dtype=jnp.int32)
    item_seq = jax.random.randint(k_items, (B, L), 1, cfg['n_items'] + 1).astype(jnp.int32)
    pos = jnp.arange(L)[None, :]
    item_seq = jnp.where(pos < item_seq_len[:, None], item_seq, 0)   # zero-pad tail
    time_seq = jax.random.uniform(k_time, (B, L), minval=0.0, maxval=45.0)

    fwd = jax.jit(functools.partial(time_model_forward, cfg=cfg))
    out = fwd(params, user, item_seq, time_seq, item_seq_len)
    out = jax.block_until_ready(out)
    assert out.shape == (B, cfg['hidden_size']), out.shape
    print("KERNEL_OK")
</pallas_src>

<mosaic_0001>
module attributes {stable_mosaic.version = 11 : i64} {
  func.func @encoder_stack_kernel(%arg0: i32, %arg1: i32, %arg2: memref<2x8xi32, #tpu.memory_space<vmem>>, %arg3: memref<2x8x32xf32, #tpu.memory_space<vmem>>, %arg4: memref<2x8x32xf32, #tpu.memory_space<vmem>>, %arg5: memref<2x8xf32, #tpu.memory_space<vmem>>, %arg6: memref<1x3x32x32xbf16, #tpu.memory_space<vmem>>, %arg7: memref<1x3x32xf32, #tpu.memory_space<vmem>>, %arg8: memref<1x32x32xbf16, #tpu.memory_space<vmem>>, %arg9: memref<1x1x32xf32, #tpu.memory_space<vmem>>, %arg10: memref<1x2x32xf32, #tpu.memory_space<vmem>>, %arg11: memref<1x32x64xbf16, #tpu.memory_space<vmem>>, %arg12: memref<1x1x64xf32, #tpu.memory_space<vmem>>, %arg13: memref<1x64x32xbf16, #tpu.memory_space<vmem>>, %arg14: memref<1x1x32xf32, #tpu.memory_space<vmem>>, %arg15: memref<1x2x32xf32, #tpu.memory_space<vmem>>, %arg16: memref<2x8x32xf32, #tpu.memory_space<vmem>>, %arg17: memref<2x8x32xf32, #tpu.memory_space<vmem>>, %arg18: memref<2x8x8xf32, #tpu.memory_space<vmem>>) attributes {dimension_semantics = [#tpu.dimension_semantics<parallel>, #tpu.dimension_semantics<arbitrary>], iteration_bounds = array<i64: 1, 2>, scalar_prefetch = 0 : i64, scratch_operands = 2 : i64, tpu.core_type = #tpu.core_type<tc>, window_params = [{transform_indices = @transform_0, window_bounds = array<i64: 2, 8>}, {transform_indices = @transform_1, window_bounds = array<i64: 2, 8, 32>}, {transform_indices = @transform_2, window_bounds = array<i64: 2, 8, 32>}, {transform_indices = @transform_3, window_bounds = array<i64: 2, 8>}, {transform_indices = @transform_4, window_bounds = array<i64: 1, 3, 32, 32>}, {transform_indices = @transform_5, window_bounds = array<i64: 1, 3, 32>}, {transform_indices = @transform_6, window_bounds = array<i64: 1, 32, 32>}, {transform_indices = @transform_7, window_bounds = array<i64: 1, 1, 32>}, {transform_indices = @transform_8, window_bounds = array<i64: 1, 2, 32>}, {transform_indices = @transform_9, window_bounds = array<i64: 1, 32, 64>}, {transform_indices = @transform_10, window_bounds = array<i64: 1, 1, 64>}, {transform_indices = @transform_11, window_bounds = array<i64: 1, 64, 32>}, {transform_indices = @transform_12, window_bounds = array<i64: 1, 1, 32>}, {transform_indices = @transform_13, window_bounds = array<i64: 1, 2, 32>}, {transform_indices = @transform_14, window_bounds = array<i64: 2, 8, 32>}]} {
    %c0_i32 = arith.constant 0 : i32
    %0 = arith.cmpi eq, %arg1, %c0_i32 : i32
    %1 = arith.extui %0 : i1 to i32
    %c0_i32_0 = arith.constant 0 : i32
    %2 = arith.cmpi ne, %1, %c0_i32_0 : i32
    scf.if %2 {
      %c0_69 = arith.constant 0 : index
      %c0_70 = arith.constant 0 : index
      %c0_71 = arith.constant 0 : index
      %161 = vector.load %arg3[%c0_69, %c0_70, %c0_71] : memref<2x8x32xf32, #tpu.memory_space<vmem>>, vector<2x8x32xf32>
      %c0_72 = arith.constant 0 : index
      %c0_73 = arith.constant 0 : index
      %c0_74 = arith.constant 0 : index
      %162 = vector.load %arg17[%c0_72, %c0_73, %c0_74] : memref<2x8x32xf32, #tpu.memory_space<vmem>>, vector<2x8x32xf32>
      tpu.vector_store %arg17[%c0_72, %c0_73, %c0_74], %161 {strides = array<i32>} : memref<2x8x32xf32, #tpu.memory_space<vmem>>, vector<2x8x32xf32>,
      %c0_75 = arith.constant 0 : index
      %c0_76 = arith.constant 0 : index
      %163 = vector.load %arg2[%c0_75, %c0_76] : memref<2x8xi32, #tpu.memory_space<vmem>>, vector<2x8xi32>
      %164 = tpu.iota {dimensions = array<i32: 0>} : vector<8x8xi32>
      %165 = tpu.iota {dimensions = array<i32: 1>} : vector<8x8xi32>
      %166 = arith.cmpi sle, %165, %164 : vector<8x8xi32>
      %167 = vector.shape_cast %166 : vector<8x8xi1> to vector<1x8x8xi1>
      %c0_i32_77 = arith.constant 0 : i32
      %168 = vector.broadcast %c0_i32_77 : i32 to vector<2x8xi32>
      %169 = arith.cmpi ne, %163, %168 : vector<2x8xi32>
      %170 = vector.shape_cast %169 : vector<2x8xi1> to vector<2x1x8xi1>
      %171 = vector.broadcast %167 : vector<1x8x8xi1> to vector<2x8x8xi1>
      %172 = vector.broadcast %170 : vector<2x1x8xi1> to vector<2x8x8xi1>
      %173 = arith.andi %171, %172 : vector<2x8x8xi1>
      %cst_78 = arith.constant 0.000000e+00 : f32
      %cst_79 = arith.constant -1.000000e+04 : f32
      %174 = vector.broadcast %cst_78 : f32 to vector<2x8x8xf32>
      %175 = vector.broadcast %cst_79 : f32 to vector<2x8x8xf32>
      %176 = arith.select %173, %174, %175 : vector<2x8x8xi1>, vector<2x8x8xf32>
      %c0_80 = arith.constant 0 : index
      %c0_81 = arith.constant 0 : index
      %177 = vector.load %arg5[%c0_80, %c0_81] : memref<2x8xf32, #tpu.memory_space<vmem>>, vector<2x8xf32>
      %178 = vector.shape_cast %177 : vector<2x8xf32> to vector<2x1x8xf32>
      %179 = vector.broadcast %178 : vector<2x1x8xf32> to vector<2x8x8xf32>
      %180 = arith.addf %176, %179 : vector<2x8x8xf32>
      %c0_82 = arith.constant 0 : index
      %c0_83 = arith.constant 0 : index
      %c0_84 = arith.constant 0 : index
      %181 = vector.load %arg18[%c0_82, %c0_83, %c0_84] : memref<2x8x8xf32, #tpu.memory_space<vmem>>, vector<2x8x8xf32>
      tpu.vector_store %arg18[%c0_82, %c0_83, %c0_84], %180 {strides = array<i32>} : memref<2x8x8xf32, #tpu.memory_space<vmem>>, vector<2x8x8xf32>,
    } else {
    }
    %c0 = arith.constant 0 : index
    %c0_1 = arith.constant 0 : index
    %c0_2 = arith.constant 0 : index
    %3 = vector.load %arg17[%c0, %c0_1, %c0_2] : memref<2x8x32xf32, #tpu.memory_space<vmem>>, vector<2x8x32xf32>
    %4 = vector.shape_cast %3 : vector<2x8x32xf32> to vector<16x32xf32>
    %5 = arith.truncf %4 : vector<16x32xf32> to vector<16x32xbf16>
    %c0_i32_3 = arith.constant 0 : i32
    %6 = arith.cmpi eq, %arg1, %c0_i32_3 : i32
    %c0_4 = arith.constant 0 : index
    %c0_5 = arith.constant 0 : index
    %c0_6 = arith.constant 0 : index
    %7 = vector.load %arg4[%c0_4, %c0_5, %c0_6] : memref<2x8x32xf32, #tpu.memory_space<vmem>>, vector<2x8x32xf32>
    %8 = arith.select %6, %7, %3 : vector<2x8x32xf32>
    %9 = vector.shape_cast %8 : vector<2x8x32xf32> to vector<16x32xf32>
    %c0_7 = arith.constant 0 : index
    %c0_8 = arith.constant 0 : index
    %c0_9 = arith.constant 0 : index
    %c0_10 = arith.constant 0 : index
    %10 = vector.load %arg6[%c0_7, %c0_8, %c0_9, %c0_10] : memref<1x3x32x32xbf16, #tpu.memory_space<vmem>>, vector<1x3x32x32xbf16>
    %11 = vector.shape_cast %10 : vector<1x3x32x32xbf16> to vector<3x32x32xbf16>
    %c0_11 = arith.constant 0 : index
    %c0_12 = arith.constant 0 : index
    %c0_13 = arith.constant 0 : index
    %12 = vector.load %arg7[%c0_11, %c0_12, %c0_13] : memref<1x3x32xf32, #tpu.memory_space<vmem>>, vector<1x3x32xf32>
    %13 = vector.shape_cast %12 : vector<1x3x32xf32> to vector<3x32xf32>
    %14 = vector.extract_strided_slice %11 {offsets = [0, 0, 0], sizes = [1, 32, 32], strides = [1, 1, 1]} : vector<3x32x32xbf16> to vector<1x32x32xbf16>
    %15 = vector.shape_cast %14 : vector<1x32x32xbf16> to vector<32x32xbf16>
    %cst = arith.constant dense<0.000000e+00> : vector<16x32xf32>
    %16 = tpu.matmul %5, %15, %cst {dimension_numbers = #tpu.dot_dimension_numbers<[1], [0], [0], [1], [0, 0, 1, 1], [], []>} : vector<16x32xbf16>, vector<32x32xbf16>, vector<16x32xf32> -> vector<16x32xf32>
    %17 = vector.extract_strided_slice %13 {offsets = [0, 0], sizes = [1, 32], strides = [1, 1]} : vector<3x32xf32> to vector<1x32xf32>
    %18 = vector.broadcast %17 : vector<1x32xf32> to vector<16x32xf32>
    %19 = arith.addf %16, %18 : vector<16x32xf32>
    %20 = vector.extract_strided_slice %11 {offsets = [1, 0, 0], sizes = [1, 32, 32], strides = [1, 1, 1]} : vector<3x32x32xbf16> to vector<1x32x32xbf16>
    %21 = vector.shape_cast %20 : vector<1x32x32xbf16> to vector<32x32xbf16>
    %cst_14 = arith.constant dense<0.000000e+00> : vector<16x32xf32>
    %22 = tpu.matmul %5, %21, %cst_14 {dimension_numbers = #tpu.dot_dimension_numbers<[1], [0], [0], [1], [0, 0, 1, 1], [], []>} : vector<16x32xbf16>, vector<32x32xbf16>, vector<16x32xf32> -> vector<16x32xf32>
    %23 = vector.extract_strided_slice %13 {offsets = [1, 0], sizes = [1, 32], strides = [1, 1]} : vector<3x32xf32> to vector<1x32xf32>
    %24 = vector.broadcast %23 : vector<1x32xf32> to vector<16x32xf32>
    %25 = arith.addf %22, %24 : vector<16x32xf32>
    %26 = arith.truncf %9 : vector<16x32xf32> to vector<16x32xbf16>
    %27 = vector.extract_strided_slice %11 {offsets = [2, 0, 0], sizes = [1, 32, 32], strides = [1, 1, 1]} : vector<3x32x32xbf16> to vector<1x32x32xbf16>
    %28 = vector.shape_cast %27 : vector<1x32x32xbf16> to vector<32x32xbf16>
    %cst_15 = arith.constant dense<0.000000e+00> : vector<16x32xf32>
    %29 = tpu.matmul %26, %28, %cst_15 {dimension_numbers = #tpu.dot_dimension_numbers<[1], [0], [0], [1], [0, 0, 1, 1], [], []>} : vector<16x32xbf16>, vector<32x32xbf16>, vector<16x32xf32> -> vector<16x32xf32>
    %30 = vector.extract_strided_slice %13 {offsets = [2, 0], sizes = [1, 32], strides = [1, 1]} : vector<3x32xf32> to vector<1x32xf32>
    %31 = vector.broadcast %30 : vector<1x32xf32> to vector<16x32xf32>
    %32 = arith.addf %29, %31 : vector<16x32xf32>
    %33 = vector.shape_cast %19 : vector<16x32xf32> to vector<2x8x32xf32>
    %34 = arith.truncf %33 : vector<2x8x32xf32> to vector<2x8x32xbf16>
    %35 = vector.shape_cast %25 : vector<16x32xf32> to vector<2x8x32xf32>
    %36 = arith.truncf %35 : vector<2x8x32xf32> to vector<2x8x32xbf16>
    %37 = vector.shape_cast %32 : vector<16x32xf32> to vector<2x8x32xf32>
    %38 = arith.truncf %37 : vector<2x8x32xf32> to vector<2x8x32xbf16>
    %c0_16 = arith.constant 0 : index
    %c0_17 = arith.constant 0 : index
    %c0_18 = arith.constant 0 : index
    %39 = vector.load %arg18[%c0_16, %c0_17, %c0_18] : memref<2x8x8xf32, #tpu.memory_space<vmem>>, vector<2x8x8xf32>
    %40 = vector.extract_strided_slice %34 {offsets = [0, 0, 0], sizes = [2, 8, 16], strides = [1, 1, 1]} : vector<2x8x32xbf16> to vector<2x8x16xbf16>
    %41 = vector.extract_strided_slice %36 {offsets = [0, 0, 0], sizes = [2, 8, 16], strides = [1, 1, 1]} : vector<2x8x32xbf16> to vector<2x8x16xbf16>
    "tpu.trace_start"() <{level = 10 : i32, message = "bld,bmd->blm"}> : () -> ()
    %cst_19 = arith.constant dense<0.000000e+00> : vector<2x8x8xf32>
    %42 = tpu.matmul %40, %41, %cst_19 {dimension_numbers = #tpu.dot_dimension_numbers<[2], [2], [1], [1], [0, 0, 0, 1, 1, 1], [0], [0]>} : vector<2x8x16xbf16>, vector<2x8x16xbf16>, vector<2x8x8xf32> -> vector<2x8x8xf32>
    "tpu.trace_stop"() : () -> ()
    %43 = arith.addf %42, %39 : vector<2x8x8xf32>
    %cst_20 = arith.constant dense<0xFF800000> : vector<2x8xf32>
    %44 = vector.multi_reduction <maximumf>, %43, %cst_20 [2] : vector<2x8x8xf32> to vector<2x8xf32>
    %45 = vector.shape_cast %44 : vector<2x8xf32> to vector<2x8x1xf32>
    %46 = vector.broadcast %45 : vector<2x8x1xf32> to vector<2x8x8xf32>
    %47 = arith.subf %43, %46 : vector<2x8x8xf32>
    %48 = math.exp %47 : vector<2x8x8xf32>
    %cst_21 = arith.constant dense<0.000000e+00> : vector<2x8xf32>
    %49 = vector.multi_reduction <add>, %48, %cst_21 [2] : vector<2x8x8xf32> to vector<2x8xf32>
    %50 = vector.shape_cast %49 : vector<2x8xf32> to vector<2x8x1xf32>
    %51 = tpu.reciprocal %50 {approx = true} : vector<2x8x1xf32> -> vector<2x8x1xf32>
    %52 = vector.broadcast %51 : vector<2x8x1xf32> to vector<2x8x8xf32>
    %53 = arith.mulf %48, %52 : vector<2x8x8xf32>
    %54 = arith.truncf %53 : vector<2x8x8xf32> to vector<2x8x8xbf16>
    %55 = vector.extract_strided_slice %38 {offsets = [0, 0, 0], sizes = [2, 8, 16], strides = [1, 1, 1]} : vector<2x8x32xbf16> to vector<2x8x16xbf16>
    "tpu.trace_start"() <{level = 10 : i32, message = "blm,bmd->bld"}> : () -> ()
    %cst_22 = arith.constant dense<0.000000e+00> : vector<2x8x16xf32>
    %56 = tpu.matmul %54, %55, %cst_22 {dimension_numbers = #tpu.dot_dimension_numbers<[2], [1], [1], [2], [0, 0, 0, 1, 1, 2], [0], [0]>} : vector<2x8x8xbf16>, vector<2x8x16xbf16>, vector<2x8x16xf32> -> vector<2x8x16xf32>
    "tpu.trace_stop"() : () -> ()
    %57 = vector.extract_strided_slice %34 {offsets = [0, 0, 16], sizes = [2, 8, 16], strides = [1, 1, 1]} : vector<2x8x32xbf16> to vector<2x8x16xbf16>
    %58 = vector.extract_strided_slice %36 {offsets = [0, 0, 16], sizes = [2, 8, 16], strides = [1, 1, 1]} : vector<2x8x32xbf16> to vector<2x8x16xbf16>
    "tpu.trace_start"() <{level = 10 : i32, message = "bld,bmd->blm"}> : () -> ()
    %cst_23 = arith.constant dense<0.000000e+00> : vector<2x8x8xf32>
    %59 = tpu.matmul %57, %58, %cst_23 {dimension_numbers = #tpu.dot_dimension_numbers<[2], [2], [1], [1], [0, 0, 0, 1, 1, 1], [0], [0]>} : vector<2x8x16xbf16>, vector<2x8x16xbf16>, vector<2x8x8xf32> -> vector<2x8x8xf32>
    "tpu.trace_stop"() : () -> ()
    %60 = arith.addf %59, %39 : vector<2x8x8xf32>
    %cst_24 = arith.constant dense<0xFF800000> : vector<2x8xf32>
    %61 = vector.multi_reduction <maximumf>, %60, %cst_24 [2] : vector<2x8x8xf32> to vector<2x8xf32>
    %62 = vector.shape_cast %61 : vector<2x8xf32> to vector<2x8x1xf32>
    %63 = vector.broadcast %62 : vector<2x8x1xf32> to vector<2x8x8xf32>
    %64 = arith.subf %60, %63 : vector<2x8x8xf32>
    %65 = math.exp %64 : vector<2x8x8xf32>
    %cst_25 = arith.constant dense<0.000000e+00> : vector<2x8xf32>
    %66 = vector.multi_reduction <add>, %65, %cst_25 [2] : vector<2x8x8xf32> to vector<2x8xf32>
    %67 = vector.shape_cast %66 : vector<2x8xf32> to vector<2x8x1xf32>
    %68 = tpu.reciprocal %67 {approx = true} : vector<2x8x1xf32> -> vector<2x8x1xf32>
    %69 = vector.broadcast %68 : vector<2x8x1xf32> to vector<2x8x8xf32>
    %70 = arith.mulf %65, %69 : vector<2x8x8xf32>
    %71 = arith.truncf %70 : vector<2x8x8xf32> to vector<2x8x8xbf16>
    %72 = vector.extract_strided_slice %38 {offsets = [0, 0, 16], sizes = [2, 8, 16], strides = [1, 1, 1]} : vector<2x8x32xbf16> to vector<2x8x16xbf16>
    "tpu.trace_start"() <{level = 10 : i32, message = "blm,bmd->bld"}> : () -> ()
    %cst_26 = arith.constant dense<0.000000e+00> : vector<2x8x16xf32>
    %73 = tpu.matmul %71, %72, %cst_26 {dimension_numbers = #tpu.dot_dimension_numbers<[2], [1], [1], [2], [0, 0, 0, 1, 1, 2], [0], [0]>} : vector<2x8x8xbf16>, vector<2x8x16xbf16>, vector<2x8x16xf32> -> vector<2x8x16xf32>
    "tpu.trace_stop"() : () -> ()
    %74 = tpu.concatenate %56, %73 in 2 : vector<2x8x16xf32>, vector<2x8x16xf32> -> vector<2x8x32xf32>
    %75 = vector.shape_cast %74 : vector<2x8x32xf32> to vector<16x32xf32>
    %76 = arith.truncf %75 : vector<16x32xf32> to vector<16x32xbf16>
    %c0_27 = arith.constant 0 : index
    %c0_28 = arith.constant 0 : index
    %c0_29 = arith.constant 0 : index
    %77 = vector.load %arg8[%c0_27, %c0_28, %c0_29] : memref<1x32x32xbf16, #tpu.memory_space<vmem>>, vector<1x32x32xbf16>
    %78 = vector.shape_cast %77 : vector<1x32x32xbf16> to vector<32x32xbf16>
    %cst_30 = arith.constant dense<0.000000e+00> : vector<16x32xf32>
    %79 = tpu.matmul %76, %78, %cst_30 {dimension_numbers = #tpu.dot_dimension_numbers<[1], [0], [0], [1], [0, 0, 1, 1], [], []>} : vector<16x32xbf16>, vector<32x32xbf16>, vector<16x32xf32> -> vector<16x32xf32>
    %c0_31 = arith.constant 0 : index
    %c0_32 = arith.constant 0 : index
    %c0_33 = arith.constant 0 : index
    %80 = vector.load %arg9[%c0_31, %c0_32, %c0_33] : memref<1x1x32xf32, #tpu.memory_space<vmem>>, vector<1x1x32xf32>
    %81 = vector.shape_cast %80 : vector<1x1x32xf32> to vector<1x32xf32>
    %82 = vector.broadcast %81 : vector<1x32xf32> to vector<16x32xf32>
    %83 = arith.addf %79, %82 : vector<16x32xf32>
    %c0_34 = arith.constant 0 : index
    %c0_35 = arith.constant 0 : index
    %c0_36 = arith.constant 0 : index
    %84 = vector.load %arg10[%c0_34, %c0_35, %c0_36] : memref<1x2x32xf32, #tpu.memory_space<vmem>>, vector<1x2x32xf32>
    %85 = vector.shape_cast %84 : vector<1x2x32xf32> to vector<2x32xf32>
    %86 = arith.addf %4, %83 : vector<16x32xf32>
    %87 = vector.extract_strided_slice %85 {offsets = [0, 0], sizes = [1, 32], strides = [1, 1]} : vector<2x32xf32> to vector<1x32xf32>
    %88 = vector.extract_strided_slice %85 {offsets = [1, 0], sizes = [1, 32], strides = [1, 1]} : vector<2x32xf32> to vector<1x32xf32>
    %cst_37 = arith.constant dense<0.000000e+00> : vector<16xf32>
    %89 = vector.multi_reduction <add>, %86, %cst_37 [1] : vector<16x32xf32> to vector<16xf32>
    %90 = vector.shape_cast %89 : vector<16xf32> to vector<16x1xf32>
    %cst_38 = arith.constant 3.200000e+01 : f32
    %91 = vector.broadcast %cst_38 : f32 to vector<16x1xf32>
    %92 = arith.divf %90, %91 : vector<16x1xf32>
    %93 = vector.broadcast %92 : vector<16x1xf32> to vector<16x32xf32>
    %94 = arith.subf %86, %93 : vector<16x32xf32>
    %95 = arith.mulf %94, %94 : vector<16x32xf32>
    %cst_39 = arith.constant dense<0.000000e+00> : vector<16xf32>
    %96 = vector.multi_reduction <add>, %95, %cst_39 [1] : vector<16x32xf32> to vector<16xf32>
    %97 = vector.shape_cast %96 : vector<16xf32> to vector<16x1xf32>
    %cst_40 = arith.constant 3.200000e+01 : f32
    %98 = vector.broadcast %cst_40 : f32 to vector<16x1xf32>
    %99 = arith.divf %97, %98 : vector<16x1xf32>
    %100 = vector.broadcast %92 : vector<16x1xf32> to vector<16x32xf32>
    %101 = arith.subf %86, %100 : vector<16x32xf32>
    %cst_41 = arith.constant 9.99999996E-13 : f32
    %102 = vector.broadcast %cst_41 : f32 to vector<16x1xf32>
    %103 = arith.addf %99, %102 : vector<16x1xf32>
    %104 = math.rsqrt %103 : vector<16x1xf32>
    %105 = vector.broadcast %104 : vector<16x1xf32> to vector<16x32xf32>
    %106 = arith.mulf %101, %105 : vector<16x32xf32>
    %107 = vector.broadcast %87 : vector<1x32xf32> to vector<16x32xf32>
    %108 = arith.mulf %106, %107 : vector<16x32xf32>
    %109 = vector.broadcast %88 : vector<1x32xf32> to vector<16x32xf32>
    %110 = arith.addf %108, %109 : vector<16x32xf32>
    %111 = arith.truncf %110 : vector<16x32xf32> to vector<16x32xbf16>
    %c0_42 = arith.constant 0 : index
    %c0_43 = arith.constant 0 : index
    %c0_44 = arith.constant 0 : index
    %112 = vector.load %arg11[%c0_42, %c0_43, %c0_44] : memref<1x32x64xbf16, #tpu.memory_space<vmem>>, vector<1x32x64xbf16>
    %113 = vector.shape_cast %112 : vector<1x32x64xbf16> to vector<32x64xbf16>
    %cst_45 = arith.constant dense<0.000000e+00> : vector<16x64xf32>
    %114 = tpu.matmul %111, %113, %cst_45 {dimension_numbers = #tpu.dot_dimension_numbers<[1], [0], [0], [1], [0, 0, 1, 1], [], []>} : vector<16x32xbf16>, vector<32x64xbf16>, vector<16x64xf32> -> vector<16x64xf32>
    %c0_46 = arith.constant 0 : index
    %c0_47 = arith.constant 0 : index
    %c0_48 = arith.constant 0 : index
    %115 = vector.load %arg12[%c0_46, %c0_47, %c0_48] : memref<1x1x64xf32, #tpu.memory_space<vmem>>, vector<1x1x64xf32>
    %116 = vector.shape_cast %115 : vector<1x1x64xf32> to vector<1x64xf32>
    %117 = vector.broadcast %116 : vector<1x64xf32> to vector<16x64xf32>
    %118 = arith.addf %114, %117 : vector<16x64xf32>
    %cst_49 = arith.constant 0.000000e+00 : f32
    %119 = vector.broadcast %cst_49 : f32 to vector<16x64xf32>
    %120 = arith.maximumf %118, %119 : vector<16x64xf32>
    %121 = arith.truncf %120 : vector<16x64xf32> to vector<16x64xbf16>
    %c0_50 = arith.constant 0 : index
    %c0_51 = arith.constant 0 : index
    %c0_52 = arith.constant 0 : index
    %122 = vector.load %arg13[%c0_50, %c0_51, %c0_52] : memref<1x64x32xbf16, #tpu.memory_space<vmem>>, vector<1x64x32xbf16>
    %123 = vector.shape_cast %122 : vector<1x64x32xbf16> to vector<64x32xbf16>
    %cst_53 = arith.constant dense<0.000000e+00> : vector<16x32xf32>
    %124 = tpu.matmul %121, %123, %cst_53 {dimension_numbers = #tpu.dot_dimension_numbers<[1], [0], [0], [1], [0, 0, 1, 1], [], []>} : vector<16x64xbf16>, vector<64x32xbf16>, vector<16x32xf32> -> vector<16x32xf32>
    %c0_54 = arith.constant 0 : index
    %c0_55 = arith.constant 0 : index
    %c0_56 = arith.constant 0 : index
    %125 = vector.load %arg14[%c0_54, %c0_55, %c0_56] : memref<1x1x32xf32, #tpu.memory_space<vmem>>, vector<1x1x32xf32>
    %126 = vector.shape_cast %125 : vector<1x1x32xf32> to vector<1x32xf32>
    %127 = vector.broadcast %126 : vector<1x32xf32> to vector<16x32xf32>
    %128 = arith.addf %124, %127 : vector<16x32xf32>
    %c0_57 = arith.constant 0 : index
    %c0_58 = arith.constant 0 : index
    %c0_59 = arith.constant 0 : index
    %129 = vector.load %arg15[%c0_57, %c0_58, %c0_59] : memref<1x2x32xf32, #tpu.memory_space<vmem>>, vector<1x2x32xf32>
    %130 = vector.shape_cast %129 : vector<1x2x32xf32> to vector<2x32xf32>
    %131 = arith.addf %110, %128 : vector<16x32xf32>
    %132 = vector.extract_strided_slice %130 {offsets = [0, 0], sizes = [1, 32], strides = [1, 1]} : vector<2x32xf32> to vector<1x32xf32>
    %133 = vector.extract_strided_slice %130 {offsets = [1, 0], sizes = [1, 32], strides = [1, 1]} : vector<2x32xf32> to vector<1x32xf32>
    %cst_60 = arith.constant dense<0.000000e+00> : vector<16xf32>
    %134 = vector.multi_reduction <add>, %131, %cst_60 [1] : vector<16x32xf32> to vector<16xf32>
    %135 = vector.shape_cast %134 : vector<16xf32> to vector<16x1xf32>
    %cst_61 = arith.constant 3.200000e+01 : f32
    %136 = vector.broadcast %cst_61 : f32 to vector<16x1xf32>
    %137 = arith.divf %135, %136 : vector<16x1xf32>
    %138 = vector.broadcast %137 : vector<16x1xf32> to vector<16x32xf32>
    %139 = arith.subf %131, %138 : vector<16x32xf32>
    %140 = arith.mulf %139, %139 : vector<16x32xf32>
    %cst_62 = arith.constant dense<0.000000e+00> : vector<16xf32>
    %141 = vector.multi_reduction <add>, %140, %cst_62 [1] : vector<16x32xf32> to vector<16xf32>
    %142 = vector.shape_cast %141 : vector<16xf32> to vector<16x1xf32>
    %cst_63 = arith.constant 3.200000e+01 : f32
    %143 = vector.broadcast %cst_63 : f32 to vector<16x1xf32>
    %144 = arith.divf %142, %143 : vector<16x1xf32>
    %145 = vector.broadcast %137 : vector<16x1xf32> to vector<16x32xf32>
    %146 = arith.subf %131, %145 : vector<16x32xf32>
    %cst_64 = arith.constant 9.99999996E-13 : f32
    %147 = vector.broadcast %cst_64 : f32 to vector<16x1xf32>
    %148 = arith.addf %144, %147 : vector<16x1xf32>
    %149 = math.rsqrt %148 : vector<16x1xf32>
    %150 = vector.broadcast %149 : vector<16x1xf32> to vector<16x32xf32>
    %151 = arith.mulf %146, %150 : vector<16x32xf32>
    %152 = vector.broadcast %132 : vector<1x32xf32> to vector<16x32xf32>
    %153 = arith.mulf %151, %152 : vector<16x32xf32>
    %154 = vector.broadcast %133 : vector<1x32xf32> to vector<16x32xf32>
    %155 = arith.addf %153, %154 : vector<16x32xf32>
    %156 = vector.shape_cast %155 : vector<16x32xf32> to vector<2x8x32xf32>
    %c0_65 = arith.constant 0 : index
    %c0_66 = arith.constant 0 : index
    %c0_67 = arith.constant 0 : index
    %157 = vector.load %arg17[%c0_65, %c0_66, %c0_67] : memref<2x8x32xf32, #tpu.memory_space<vmem>>, vector<2x8x32xf32>
    tpu.vector_store %arg17[%c0_65, %c0_66, %c0_67], %156 {strides = array<i32>} : memref<2x8x32xf32, #tpu.memory_space<vmem>>, vector<2x8x32xf32>,
    %c1_i32 = arith.constant 1 : i32
    %158 = arith.cmpi eq, %arg1, %c1_i32 : i32
    %159 = arith.extui %158 : i1 to i32
    %c0_i32_68 = arith.constant 0 : i32
    %160 = arith.cmpi ne, %159, %c0_i32_68 : i32
    scf.if %160 {
      %c0_69 = arith.constant 0 : index
      %c0_70 = arith.constant 0 : index
      %c0_71 = arith.constant 0 : index
      %161 = vector.load %arg16[%c0_69, %c0_70, %c0_71] : memref<2x8x32xf32, #tpu.memory_space<vmem>>, vector<2x8x32xf32>
      tpu.vector_store %arg16[%c0_69, %c0_70, %c0_71], %156 {strides = array<i32>} : memref<2x8x32xf32, #tpu.memory_space<vmem>>, vector<2x8x32xf32>,
    } else {
    }
    return
  }
  func.func @transform_0(%arg0: i32, %arg1: i32) -> (i32, i32) {
    %c0_i32 = arith.constant 0 : i32
    %c0_i32_0 = arith.constant 0 : i32
    return %arg0, %c0_i32 : i32, i32
  }
  func.func @transform_1(%arg0: i32, %arg1: i32) -> (i32, i32, i32) {
    %c0_i32 = arith.constant 0 : i32
    %c0_i32_0 = arith.constant 0 : i32
    %c0_i32_1 = arith.constant 0 : i32
    return %arg0, %c0_i32, %c0_i32_0 : i32, i32, i32
  }
  func.func @transform_2(%arg0: i32, %arg1: i32) -> (i32, i32, i32) {
    %c0_i32 = arith.constant 0 : i32
    %c0_i32_0 = arith.constant 0 : i32
    %c0_i32_1 = arith.constant 0 : i32
    return %arg0, %c0_i32, %c0_i32_0 : i32, i32, i32
  }
  func.func @transform_3(%arg0: i32, %arg1: i32) -> (i32, i32) {
    %c0_i32 = arith.constant 0 : i32
    %c0_i32_0 = arith.constant 0 : i32
    return %arg0, %c0_i32 : i32, i32
  }
  func.func @transform_4(%arg0: i32, %arg1: i32) -> (i32, i32, i32, i32) {
    %c0_i32 = arith.constant 0 : i32
    %c0_i32_0 = arith.constant 0 : i32
    %c0_i32_1 = arith.constant 0 : i32
    %c0_i32_2 = arith.constant 0 : i32
    return %arg1, %c0_i32, %c0_i32_0, %c0_i32_1 : i32, i32, i32, i32
  }
  func.func @transform_5(%arg0: i32, %arg1: i32) -> (i32, i32, i32) {
    %c0_i32 = arith.constant 0 : i32
    %c0_i32_0 = arith.constant 0 : i32
    %c0_i32_1 = arith.constant 0 : i32
    return %arg1, %c0_i32, %c0_i32_0 : i32, i32, i32
  }
  func.func @transform_6(%arg0: i32, %arg1: i32) -> (i32, i32, i32) {
    %c0_i32 = arith.constant 0 : i32
    %c0_i32_0 = arith.constant 0 : i32
    %c0_i32_1 = arith.constant 0 : i32
    return %arg1, %c0_i32, %c0_i32_0 : i32, i32, i32
  }
  func.func @transform_7(%arg0: i32, %arg1: i32) -> (i32, i32, i32) {
    %c0_i32 = arith.constant 0 : i32
    %c0_i32_0 = arith.constant 0 : i32
    %c0_i32_1 = arith.constant 0 : i32
    return %arg1, %c0_i32, %c0_i32_0 : i32, i32, i32
  }
  func.func @transform_8(%arg0: i32, %arg1: i32) -> (i32, i32, i32) {
    %c0_i32 = arith.constant 0 : i32
    %c0_i32_0 = arith.constant 0 : i32
    %c0_i32_1 = arith.constant 0 : i32
    return %arg1, %c0_i32, %c0_i32_0 : i32, i32, i32
  }
  func.func @transform_9(%arg0: i32, %arg1: i32) -> (i32, i32, i32) {
    %c0_i32 = arith.constant 0 : i32
    %c0_i32_0 = arith.constant 0 : i32
    %c0_i32_1 = arith.constant 0 : i32
    return %arg1, %c0_i32, %c0_i32_0 : i32, i32, i32
  }
  func.func @transform_10(%arg0: i32, %arg1: i32) -> (i32, i32, i32) {
    %c0_i32 = arith.constant 0 : i32
    %c0_i32_0 = arith.constant 0 : i32
    %c0_i32_1 = arith.constant 0 : i32
    return %arg1, %c0_i32, %c0_i32_0 : i32, i32, i32
  }
  func.func @transform_11(%arg0: i32, %arg1: i32) -> (i32, i32, i32) {
    %c0_i32 = arith.constant 0 : i32
    %c0_i32_0 = arith.constant 0 : i32
    %c0_i32_1 = arith.constant 0 : i32
    return %arg1, %c0_i32, %c0_i32_0 : i32, i32, i32
  }
  func.func @transform_12(%arg0: i32, %arg1: i32) -> (i32, i32, i32) {
    %c0_i32 = arith.constant 0 : i32
    %c0_i32_0 = arith.constant 0 : i32
    %c0_i32_1 = arith.constant 0 : i32
    return %arg1, %c0_i32, %c0_i32_0 : i32, i32, i32
  }
  func.func @transform_13(%arg0: i32, %arg1: i32) -> (i32, i32, i32) {
    %c0_i32 = arith.constant 0 : i32
    %c0_i32_0 = arith.constant 0 : i32
    %c0_i32_1 = arith.constant 0 : i32
    return %arg1, %c0_i32, %c0_i32_0 : i32, i32, i32
  }
  func.func @transform_14(%arg0: i32, %arg1: i32) -> (i32, i32, i32) {
    %c0_i32 = arith.constant 0 : i32
    %c0_i32_0 = arith.constant 0 : i32
    %c0_i32_1 = arith.constant 0 : i32
    return %arg0, %c0_i32, %c0_i32_0 : i32, i32, i32
  }
}

module attributes {stable_mosaic.version = 11 : i64} {
  func.func @gated_fusion_kernel(%arg0: i32, %arg1: memref<16x32xf32, #tpu.memory_space<vmem>>, %arg2: memref<16x768xbf16, #tpu.memory_space<vmem>>, %arg3: memref<768x32xbf16, #tpu.memory_space<vmem>>, %arg4: memref<1x32xf32, #tpu.memory_space<vmem>>, %arg5: memref<2x32xf32, #tpu.memory_space<vmem>>, %arg6: memref<1x1xf32, #tpu.memory_space<vmem>>, %arg7: memref<16x32xf32, #tpu.memory_space<vmem>>) attributes {dimension_semantics = [#tpu.dimension_semantics<parallel>], iteration_bounds = array<i64: 1>, scalar_prefetch = 0 : i64, scratch_operands = 0 : i64, tpu.core_type = #tpu.core_type<tc>, window_params = [{transform_indices = @transform_0, window_bounds = array<i64: 16, 32>}, {transform_indices = @transform_1, window_bounds = array<i64: 16, 768>}, {pipeline_mode = #tpu.pipeline_mode<synchronous>, transform_indices = @transform_2, window_bounds = array<i64: 768, 32>}, {pipeline_mode = #tpu.pipeline_mode<synchronous>, transform_indices = @transform_3, window_bounds = array<i64: 1, 32>}, {pipeline_mode = #tpu.pipeline_mode<synchronous>, transform_indices = @transform_4, window_bounds = array<i64: 2, 32>}, {pipeline_mode = #tpu.pipeline_mode<synchronous>, transform_indices = @transform_5, window_bounds = array<i64: 1, 1>}, {transform_indices = @transform_6, window_bounds = array<i64: 16, 32>}]} {
    %c0 = arith.constant 0 : index
    %c0_0 = arith.constant 0 : index
    %0 = vector.load %arg1[%c0, %c0_0] : memref<16x32xf32, #tpu.memory_space<vmem>>, vector<16x32xf32>
    %c0_1 = arith.constant 0 : index
    %c0_2 = arith.constant 0 : index
    %1 = vector.load %arg2[%c0_1, %c0_2] : memref<16x768xbf16, #tpu.memory_space<vmem>>, vector<16x768xbf16>
    %c0_3 = arith.constant 0 : index
    %c0_4 = arith.constant 0 : index
    %2 = vector.load %arg3[%c0_3, %c0_4] : memref<768x32xbf16, #tpu.memory_space<vmem>>, vector<768x32xbf16>
    %cst = arith.constant dense<0.000000e+00> : vector<16x32xf32>
    %3 = tpu.matmul %1, %2, %cst {dimension_numbers = #tpu.dot_dimension_numbers<[1], [0], [0], [1], [0, 0, 1, 1], [], []>} : vector<16x768xbf16>, vector<768x32xbf16>, vector<16x32xf32> -> vector<16x32xf32>
    %c0_5 = arith.constant 0 : index
    %c0_6 = arith.constant 0 : index
    %4 = vector.load %arg4[%c0_5, %c0_6] : memref<1x32xf32, #tpu.memory_space<vmem>>, vector<1x32xf32>
    %5 = vector.broadcast %4 : vector<1x32xf32> to vector<16x32xf32>
    %6 = arith.addf %3, %5 : vector<16x32xf32>
    %c0_7 = arith.constant 0 : index
    %c0_8 = arith.constant 0 : index
    %7 = vector.load %arg5[%c0_7, %c0_8] : memref<2x32xf32, #tpu.memory_space<vmem>>, vector<2x32xf32>
    %8 = vector.extract_strided_slice %7 {offsets = [0, 0], sizes = [1, 32], strides = [1, 1]} : vector<2x32xf32> to vector<1x32xf32>
    %9 = vector.broadcast %8 : vector<1x32xf32> to vector<16x32xf32>
    %10 = arith.mulf %0, %9 : vector<16x32xf32>
    %cst_9 = arith.constant dense<0.000000e+00> : vector<16xf32>
    %11 = vector.multi_reduction <add>, %10, %cst_9 [1] : vector<16x32xf32> to vector<16xf32>
    %12 = vector.shape_cast %11 : vector<16xf32> to vector<16x1xf32>
    %13 = vector.extract_strided_slice %7 {offsets = [1, 0], sizes = [1, 32], strides = [1, 1]} : vector<2x32xf32> to vector<1x32xf32>
    %14 = vector.broadcast %13 : vector<1x32xf32> to vector<16x32xf32>
    %15 = arith.mulf %6, %14 : vector<16x32xf32>
    %cst_10 = arith.constant dense<0.000000e+00> : vector<16xf32>
    %16 = vector.multi_reduction <add>, %15, %cst_10 [1] : vector<16x32xf32> to vector<16xf32>
    %17 = vector.shape_cast %16 : vector<16xf32> to vector<16x1xf32>
    %18 = arith.addf %12, %17 : vector<16x1xf32>
    %c0_11 = arith.constant 0 : index
    %c0_12 = arith.constant 0 : index
    %19 = vector.load %arg6[%c0_11, %c0_12] : memref<1x1xf32, #tpu.memory_space<vmem>>, vector<1x1xf32>
    %20 = vector.broadcast %19 : vector<1x1xf32> to vector<16x1xf32>
    %21 = arith.addf %18, %20 : vector<16x1xf32>
    %22 = arith.negf %21 : vector<16x1xf32>
    %23 = math.exp %22 : vector<16x1xf32>
    %cst_13 = arith.constant 1.000000e+00 : f32
    %24 = vector.broadcast %cst_13 : f32 to vector<16x1xf32>
    %25 = arith.addf %24, %23 : vector<16x1xf32>
    %26 = arith.divf %24, %25 : vector<16x1xf32>
    %27 = vector.broadcast %26 : vector<16x1xf32> to vector<16x32xf32>
    %28 = arith.mulf %27, %0 : vector<16x32xf32>
    %cst_14 = arith.constant 1.000000e+00 : f32
    %29 = vector.broadcast %cst_14 : f32 to vector<16x1xf32>
    %30 = arith.subf %29, %26 : vector<16x1xf32>
    %31 = vector.broadcast %30 : vector<16x1xf32> to vector<16x32xf32>
    %32 = arith.mulf %31, %6 : vector<16x32xf32>
    %33 = arith.addf %28, %32 : vector<16x32xf32>
    %c0_15 = arith.constant 0 : index
    %c0_16 = arith.constant 0 : index
    %34 = vector.load %arg7[%c0_15, %c0_16] : memref<16x32xf32, #tpu.memory_space<vmem>>, vector<16x32xf32>
    tpu.vector_store %arg7[%c0_15, %c0_16], %33 {strides = array<i32>} : memref<16x32xf32, #tpu.memory_space<vmem>>, vector<16x32xf32>,
    return
  }
  func.func @transform_0(%arg0: i32) -> (i32, i32) {
    %c0_i32 = arith.constant 0 : i32
    %c0_i32_0 = arith.constant 0 : i32
    return %arg0, %c0_i32 : i32, i32
  }
  func.func @transform_1(%arg0: i32) -> (i32, i32) {
    %c0_i32 = arith.constant 0 : i32
    %c0_i32_0 = arith.constant 0 : i32
    return %arg0, %c0_i32 : i32, i32
  }
  func.func @transform_2(%arg0: i32) -> (i32, i32) {
    %c0_i32 = arith.constant 0 : i32
    %c0_i32_0 = arith.constant 0 : i32
    %c0_i32_1 = arith.constant 0 : i32
    return %c0_i32, %c0_i32_0 : i32, i32
  }
  func.func @transform_3(%arg0: i32) -> (i32, i32) {
    %c0_i32 = arith.constant 0 : i32
    %c0_i32_0 = arith.constant 0 : i32
    %c0_i32_1 = arith.constant 0 : i32
    return %c0_i32, %c0_i32_0 : i32, i32
  }
  func.func @transform_4(%arg0: i32) -> (i32, i32) {
    %c0_i32 = arith.constant 0 : i32
    %c0_i32_0 = arith.constant 0 : i32
    %c0_i32_1 = arith.constant 0 : i32
    return %c0_i32, %c0_i32_0 : i32, i32
  }
  func.func @transform_5(%arg0: i32) -> (i32, i32) {
    %c0_i32 = arith.constant 0 : i32
    %c0_i32_0 = arith.constant 0 : i32
    %c0_i32_1 = arith.constant 0 : i32
    return %c0_i32, %c0_i32_0 : i32, i32
  }
  func.func @transform_6(%arg0: i32) -> (i32, i32) {
    %c0_i32 = arith.constant 0 : i32
    %c0_i32_0 = arith.constant 0 : i32
    return %arg0, %c0_i32 : i32, i32
  }
}

</mosaic_0001>

<llo_original>
// kernel: time_model_forward.4
$region0: #{time_model_forward.4}
  #allocation0 [shape = 'u32[]', space=smem, size = 0x4, offset = 0x4, fixed_abs, tag = 'smem constant byte address 0x4 - core index']
  #allocation1 [shape = 'u32[144,128]{1,0:T(1,128)}', space=vmem, size = 0x12000, scoped, tag = 'internal scratch']
  #allocation2 [shape = 'f32[1,1]{1,0:T(1,128)S(1)}', space=vmem, size = 0x200, scoped, tag = 'scoped memory for time_model_forward.4']
  %s0 = inlined_call_operand.vmem [shape: f32[16,32], index: 0, kind: input, shape index: {}]
  %s1 = inlined_call_operand.vmem [shape: bf16[16,768], index: 1, kind: input, shape index: {}]
  %s2 = inlined_call_operand.vmem [shape: bf16[768,32], index: 2, kind: input, shape index: {}]
  %s3 = inlined_call_operand.vmem [shape: f32[1,32], index: 3, kind: input, shape index: {}]
  %s4 = inlined_call_operand.vmem [shape: f32[2,32], index: 4, kind: input, shape index: {}]
  %s5 = inlined_call_operand.<no memory space> [shape: f32[1,1], index: 5, kind: input, shape index: {}]
  %s6 = inlined_call_operand.vmem [shape: f32[16,32], index: 6, kind: output, shape index: {}]
  %s7 = sld [smem:[#allocation0]]
  $region34: #{time_model_forward.4} parent=0
    _
  %s9 = ssub.s32 1, %s7
  %s10 = scalar_select 0, %s9, %s7
  %v11 = vstv %s5
  %12 = vst [vmem:[#allocation2] sm:$0x1] %v11
  // Predicated region
  $region2: #{time_model_forward.4} parent=0 // pred_check
    _
  $region3: #{time_model_forward.4} parent=0 // pred_check_branch
    %14 = sbr.rel (0) target = $region5
  $region4: #{time_model_forward.4} parent=0 // pred_region
    _
  $region5: #{time_model_forward.4} parent=0 // pred_fallthru
    _
  // Predicated region
  $region6: #{time_model_forward.4} parent=0 // pred_check
    _
  $region7: #{time_model_forward.4} parent=0 // pred_check_branch
    %16 = sbr.rel (0) target = $region9
  $region8: #{time_model_forward.4} parent=0 // pred_region
    _
  $region9: #{time_model_forward.4} parent=0 // pred_fallthru
    _
  // Predicated region
  $region10: #{time_model_forward.4} parent=0 // pred_check
    _
  $region11: #{time_model_forward.4} parent=0 // pred_check_branch
    %18 = sbr.rel (0) target = $region13
  $region12: #{time_model_forward.4} parent=0 // pred_region
    _
  $region13: #{time_model_forward.4} parent=0 // pred_fallthru
    _
  // Predicated region
  $region14: #{time_model_forward.4} parent=0 // pred_check
    _
  $region15: #{time_model_forward.4} parent=0 // pred_check_branch
    %20 = sbr.rel (0) target = $region17
  $region16: #{time_model_forward.4} parent=0 // pred_region
    _
  $region17: #{time_model_forward.4} parent=0 // pred_fallthru
    _
  // Predicated region
  $region18: #{time_model_forward.4} parent=0 // pred_check
    _
  $region19: #{time_model_forward.4} parent=0 // pred_check_branch
    %22 = sbr.rel (0) target = $region21
  $region20: #{time_model_forward.4} parent=0 // pred_region
    _
  $region21: #{time_model_forward.4} parent=0 // pred_fallthru
    _
  // Predicated region
  $region22: #{time_model_forward.4} parent=0 // pred_check
    _
  $region23: #{time_model_forward.4} parent=0 // pred_check_branch
    %24 = sbr.rel (0) target = $region25
  $region24: #{time_model_forward.4} parent=0 // pred_region
    _
  $region25: #{time_model_forward.4} parent=0 // pred_fallthru
    _
  %v26 = vld [vmem:[%s0] sm:$0xff]
  %v27 = vld [vmem:[%s0 + $0x8] sm:$0xff]
  %v28 = vld [vmem:[%s1] sm:$0xff]
  %v29 = vld [vmem:[%s1 + $0x8] sm:$0xff]
  %v30 = vld [vmem:[%s1 + $0x10] sm:$0xff]
  %v31 = vld [vmem:[%s1 + $0x18] sm:$0xff]
  %v32 = vld [vmem:[%s1 + $0x20] sm:$0xff]
  %v33 = vld [vmem:[%s1 + $0x28] sm:$0xff]
  %v34 = vld [vmem:[%s2] sm:$0xf]
  %v35 = vld [vmem:[%s2 + $0x4] sm:$0xf]
  %v36 = vld [vmem:[%s2 + $0x8] sm:$0xf]
  %v37 = vld [vmem:[%s2 + $0xc] sm:$0xf]
  %v38 = vld [vmem:[%s2 + $0x10] sm:$0xf]
  %v39 = vld [vmem:[%s2 + $0x14] sm:$0xf]
  %v40 = vld [vmem:[%s2 + $0x18] sm:$0xf]
  %v41 = vld [vmem:[%s2 + $0x1c] sm:$0xf]
  %v42 = vld [vmem:[%s2 + $0x20] sm:$0xf]
  %v43 = vld [vmem:[%s2 + $0x24] sm:$0xf]
  %v44 = vld [vmem:[%s2 + $0x28] sm:$0xf]
  %v45 = vld [vmem:[%s2 + $0x2c] sm:$0xf]
  %v46 = vld [vmem:[%s2 + $0x30] sm:$0xf]
  %v47 = vld [vmem:[%s2 + $0x34] sm:$0xf]
  %v48 = vld [vmem:[%s2 + $0x38] sm:$0xf]
  %v49 = vld [vmem:[%s2 + $0x3c] sm:$0xf]
  %v50 = vld [vmem:[%s2 + $0x40] sm:$0xf]
  %v51 = vld [vmem:[%s2 + $0x44] sm:$0xf]
  %v52 = vld [vmem:[%s2 + $0x48] sm:$0xf]
  %v53 = vld [vmem:[%s2 + $0x4c] sm:$0xf]
  %v54 = vld [vmem:[%s2 + $0x50] sm:$0xf]
  %v55 = vld [vmem:[%s2 + $0x54] sm:$0xf]
  %v56 = vld [vmem:[%s2 + $0x58] sm:$0xf]
  %v57 = vld [vmem:[%s2 + $0x5c] sm:$0xf]
  %v58 = vld [vmem:[%s2 + $0x60] sm:$0xf]
  %v59 = vld [vmem:[%s2 + $0x64] sm:$0xf]
  %v60 = vld [vmem:[%s2 + $0x68] sm:$0xf]
  %v61 = vld [vmem:[%s2 + $0x6c] sm:$0xf]
  %v62 = vld [vmem:[%s2 + $0x70] sm:$0xf]
  %v63 = vld [vmem:[%s2 + $0x74] sm:$0xf]
  %v64 = vld [vmem:[%s2 + $0x78] sm:$0xf]
  %v65 = vld [vmem:[%s2 + $0x7c] sm:$0xf]
  %v66 = vld [vmem:[%s2 + $0x80] sm:$0xf]
  %v67 = vld [vmem:[%s2 + $0x84] sm:$0xf]
  %v68 = vld [vmem:[%s2 + $0x88] sm:$0xf]
  %v69 = vld [vmem:[%s2 + $0x8c] sm:$0xf]
  %v70 = vld [vmem:[%s2 + $0x90] sm:$0xf]
  %v71 = vld [vmem:[%s2 + $0x94] sm:$0xf]
  %v72 = vld [vmem:[%s2 + $0x98] sm:$0xf]
  %v73 = vld [vmem:[%s2 + $0x9c] sm:$0xf]
  %v74 = vld [vmem:[%s2 + $0xa0] sm:$0xf]
  %v75 = vld [vmem:[%s2 + $0xa4] sm:$0xf]
  %v76 = vld [vmem:[%s2 + $0xa8] sm:$0xf]
  %v77 = vld [vmem:[%s2 + $0xac] sm:$0xf]
  %v78 = vld [vmem:[%s2 + $0xb0] sm:$0xf]
  %v79 = vld [vmem:[%s2 + $0xb4] sm:$0xf]
  %v80 = vld [vmem:[%s2 + $0xb8] sm:$0xf]
  %v81 = vld [vmem:[%s2 + $0xbc] sm:$0xf]
  %v82 = vld [vmem:[%s2 + $0xc0] sm:$0xf]
  %v83 = vld [vmem:[%s2 + $0xc4] sm:$0xf]
  %v84 = vld [vmem:[%s2 + $0xc8] sm:$0xf]
  %v85 = vld [vmem:[%s2 + $0xcc] sm:$0xf]
  %v86 = vld [vmem:[%s2 + $0xd0] sm:$0xf]
  %v87 = vld [vmem:[%s2 + $0xd4] sm:$0xf]
  %v88 = vld [vmem:[%s2 + $0xd8] sm:$0xf]
  %v89 = vld [vmem:[%s2 + $0xdc] sm:$0xf]
  %v90 = vld [vmem:[%s2 + $0xe0] sm:$0xf]
  %v91 = vld [vmem:[%s2 + $0xe4] sm:$0xf]
  %v92 = vld [vmem:[%s2 + $0xe8] sm:$0xf]
  %v93 = vld [vmem:[%s2 + $0xec] sm:$0xf]
  %v94 = vld [vmem:[%s2 + $0xf0] sm:$0xf]
  %v95 = vld [vmem:[%s2 + $0xf4] sm:$0xf]
  %v96 = vld [vmem:[%s2 + $0xf8] sm:$0xf]
  %v97 = vld [vmem:[%s2 + $0xfc] sm:$0xf]
  %v98 = vld [vmem:[%s2 + $0x100] sm:$0xf]
  %v99 = vld [vmem:[%s2 + $0x104] sm:$0xf]
  %v100 = vld [vmem:[%s2 + $0x108] sm:$0xf]
  %v101 = vld [vmem:[%s2 + $0x10c] sm:$0xf]
  %v102 = vld [vmem:[%s2 + $0x110] sm:$0xf]
  %v103 = vld [vmem:[%s2 + $0x114] sm:$0xf]
  %v104 = vld [vmem:[%s2 + $0x118] sm:$0xf]
  %v105 = vld [vmem:[%s2 + $0x11c] sm:$0xf]
  %v106 = vld [vmem:[%s2 + $0x120] sm:$0xf]
  %v107 = vld [vmem:[%s2 + $0x124] sm:$0xf]
  %v108 = vld [vmem:[%s2 + $0x128] sm:$0xf]
  %v109 = vld [vmem:[%s2 + $0x12c] sm:$0xf]
  %v110 = vld [vmem:[%s2 + $0x130] sm:$0xf]
  %v111 = vld [vmem:[%s2 + $0x134] sm:$0xf]
  %v112 = vld [vmem:[%s2 + $0x138] sm:$0xf]
  %v113 = vld [vmem:[%s2 + $0x13c] sm:$0xf]
  %v114 = vld [vmem:[%s2 + $0x140] sm:$0xf]
  %v115 = vld [vmem:[%s2 + $0x144] sm:$0xf]
  %v116 = vld [vmem:[%s2 + $0x148] sm:$0xf]
  %v117 = vld [vmem:[%s2 + $0x14c] sm:$0xf]
  %v118 = vld [vmem:[%s2 + $0x150] sm:$0xf]
  %v119 = vld [vmem:[%s2 + $0x154] sm:$0xf]
  %v120 = vld [vmem:[%s2 + $0x158] sm:$0xf]
  %v121 = vld [vmem:[%s2 + $0x15c] sm:$0xf]
  %v122 = vld [vmem:[%s2 + $0x160] sm:$0xf]
  %v123 = vld [vmem:[%s2 + $0x164] sm:$0xf]
  %v124 = vld [vmem:[%s2 + $0x168] sm:$0xf]
  %v125 = vld [vmem:[%s2 + $0x16c] sm:$0xf]
  %v126 = vld [vmem:[%s2 + $0x170] sm:$0xf]
  %v127 = vld [vmem:[%s2 + $0x174] sm:$0xf]
  %v128 = vld [vmem:[%s2 + $0x178] sm:$0xf]
  %v129 = vld [vmem:[%s2 + $0x17c] sm:$0xf]
  %v130 = vld [vmem:[%s3] sm:$0x1]
  %v132 = vlaneseq
  %v133 = vshrl.u32 %v132, 7
  %v134 = vsub.s32 0, %v133
  %v135 = vrot.slane %v130, %v134
  %v143 = vunpack.c.l.b16 %v28
  %v144 = vunpack.c.h.b16 %v28
  %v145 = vunpack.c.l.b16 %v29
  %v146 = vunpack.c.h.b16 %v29
  %v147 = vunpack.c.l.b16 %v30
  %v148 = vunpack.c.h.b16 %v30
  %v149 = vunpack.c.l.b16 %v31
  %v150 = vunpack.c.h.b16 %v31
  %v151 = vunpack.c.l.b16 %v32
  %v152 = vunpack.c.h.b16 %v32
  %v153 = vunpack.c.l.b16 %v33
  %v154 = vunpack.c.h.b16 %v33
  %v155 = vpack.c.b16 %v149, %v143
  %v156 = vpack.c.b16 %v150, %v144
  %v157 = vpack.c.b16 %v151, %v145
  %v158 = vpack.c.b16 %v152, %v146
  %v159 = vpack.c.b16 %v153, %v147
  %v160 = vpack.c.b16 %v154, %v148
  %v263 = vunpack.c.l.b16 %v34
  %v264 = vunpack.c.l.b16 %v35
  %v265 = vunpack.c.l.b16 %v36
  %v266 = vunpack.c.l.b16 %v37
  %v267 = vunpack.c.l.b16 %v38
  %v268 = vunpack.c.l.b16 %v39
  %v269 = vunpack.c.l.b16 %v40
  %v270 = vunpack.c.l.b16 %v41
  %v271 = vunpack.c.l.b16 %v42
  %v272 = vunpack.c.l.b16 %v43
  %v273 = vunpack.c.l.b16 %v44
  %v274 = vunpack.c.l.b16 %v45
  %v275 = vunpack.c.l.b16 %v46
  %v276 = vunpack.c.l.b16 %v47
  %v277 = vunpack.c.l.b16 %v48
  %v278 = vunpack.c.l.b16 %v49
  %v279 = vunpack.c.l.b16 %v50
  %v280 = vunpack.c.l.b16 %v51
  %v281 = vunpack.c.l.b16 %v52
  %v282 = vunpack.c.l.b16 %v53
  %v283 = vunpack.c.l.b16 %v54
  %v284 = vunpack.c.l.b16 %v55
  %v285 = vunpack.c.l.b16 %v56
  %v286 = vunpack.c.l.b16 %v57
  %v287 = vunpack.c.l.b16 %v58
  %v288 = vunpack.c.l.b16 %v59
  %v289 = vunpack.c.l.b16 %v60
  %v290 = vunpack.c.l.b16 %v61
  %v291 = vunpack.c.l.b16 %v62
  %v292 = vunpack.c.l.b16 %v63
  %v293 = vunpack.c.l.b16 %v64
  %v294 = vunpack.c.l.b16 %v65
  %v295 = vunpack.c.l.b16 %v66
  %v296 = vunpack.c.l.b16 %v67
  %v297 = vunpack.c.l.b16 %v68
  %v298 = vunpack.c.l.b16 %v69
  %v299 = vunpack.c.l.b16 %v70
  %v300 = vunpack.c.l.b16 %v71
  %v301 = vunpack.c.l.b16 %v72
  %v302 = vunpack.c.l.b16 %v73
  %v303 = vunpack.c.l.b16 %v74
  %v304 = vunpack.c.l.b16 %v75
  %v305 = vunpack.c.l.b16 %v76
  %v306 = vunpack.c.l.b16 %v77
  %v307 = vunpack.c.l.b16 %v78
  %v308 = vunpack.c.l.b16 %v79
  %v309 = vunpack.c.l.b16 %v80
  %v310 = vunpack.c.l.b16 %v81
  %v311 = vunpack.c.l.b16 %v82
  %v312 = vunpack.c.l.b16 %v83
  %v313 = vunpack.c.l.b16 %v84
  %v314 = vunpack.c.l.b16 %v85
  %v315 = vunpack.c.l.b16 %v86
  %v316 = vunpack.c.l.b16 %v87
  %v317 = vunpack.c.l.b16 %v88
  %v318 = vunpack.c.l.b16 %v89
  %v319 = vunpack.c.l.b16 %v90
  %v320 = vunpack.c.l.b16 %v91
  %v321 = vunpack.c.l.b16 %v92
  %v322 = vunpack.c.l.b16 %v93
  %v323 = vunpack.c.l.b16 %v94
  %v324 = vunpack.c.l.b16 %v95
  %v325 = vunpack.c.l.b16 %v96
  %v326 = vunpack.c.l.b16 %v97
  %v327 = vunpack.c.l.b16 %v98
  %v328 = vunpack.c.l.b16 %v99
  %v329 = vunpack.c.l.b16 %v100
  %v330 = vunpack.c.l.b16 %v101
  %v331 = vunpack.c.l.b16 %v102
  %v332 = vunpack.c.l.b16 %v103
  %v333 = vunpack.c.l.b16 %v104
  %v334 = vunpack.c.l.b16 %v105
  %v335 = vunpack.c.l.b16 %v106
  %v336 = vunpack.c.l.b16 %v107
  %v337 = vunpack.c.l.b16 %v108
  %v338 = vunpack.c.l.b16 %v109
  %v339 = vunpack.c.l.b16 %v110
  %v340 = vunpack.c.l.b16 %v111
  %v341 = vunpack.c.l.b16 %v112
  %v342 = vunpack.c.l.b16 %v113
  %v343 = vunpack.c.l.b16 %v114
  %v344 = vunpack.c.l.b16 %v115
  %v345 = vunpack.c.l.b16 %v116
  %v346 = vunpack.c.l.b16 %v117
  %v347 = vunpack.c.l.b16 %v118
  %v348 = vunpack.c.l.b16 %v119
  %v349 = vunpack.c.l.b16 %v120
  %v350 = vunpack.c.l.b16 %v121
  %v351 = vunpack.c.l.b16 %v122
  %v352 = vunpack.c.l.b16 %v123
  %v353 = vunpack.c.l.b16 %v124
  %v354 = vunpack.c.l.b16 %v125
  %v355 = vunpack.c.l.b16 %v126
  %v356 = vunpack.c.l.b16 %v127
  %v357 = vunpack.c.l.b16 %v128
  %v358 = vunpack.c.l.b16 %v129
  %v359 = vpack.c.b16 %v264, %v263
  %v360 = vpack.c.b16 %v266, %v265
  %v361 = vpack.c.b16 %v268, %v267
  %v362 = vpack.c.b16 %v270, %v269
  %v363 = vpack.c.b16 %v272, %v271
  %v364 = vpack.c.b16 %v274, %v273
  %v365 = vpack.c.b16 %v276, %v275
  %v366 = vpack.c.b16 %v278, %v277
  %v367 = vpack.c.b16 %v280, %v279
  %v368 = vpack.c.b16 %v282, %v281
  %v369 = vpack.c.b16 %v284, %v283
  %v370 = vpack.c.b16 %v286, %v285
  %v371 = vpack.c.b16 %v288, %v287
  %v372 = vpack.c.b16 %v290, %v289
  %v373 = vpack.c.b16 %v292, %v291
  %v374 = vpack.c.b16 %v294, %v293
  %v375 = vpack.c.b16 %v296, %v295
  %v376 = vpack.c.b16 %v298, %v297
  %v377 = vpack.c.b16 %v300, %v299
  %v378 = vpack.c.b16 %v302, %v301
  %v379 = vpack.c.b16 %v304, %v303
  %v380 = vpack.c.b16 %v306, %v305
  %v381 = vpack.c.b16 %v308, %v307
  %v382 = vpack.c.b16 %v310, %v309
  %v383 = vpack.c.b16 %v312, %v311
  %v384 = vpack.c.b16 %v314, %v313
  %v385 = vpack.c.b16 %v316, %v315
  %v386 = vpack.c.b16 %v318, %v317
  %v387 = vpack.c.b16 %v320, %v319
  %v388 = vpack.c.b16 %v322, %v321
  %v389 = vpack.c.b16 %v324, %v323
  %v390 = vpack.c.b16 %v326, %v325
  %v391 = vpack.c.b16 %v328, %v327
  %v392 = vpack.c.b16 %v330, %v329
  %v393 = vpack.c.b16 %v332, %v331
  %v394 = vpack.c.b16 %v334, %v333
  %v395 = vpack.c.b16 %v336, %v335
  %v396 = vpack.c.b16 %v338, %v337
  %v397 = vpack.c.b16 %v340, %v339
  %v398 = vpack.c.b16 %v342, %v341
  %v399 = vpack.c.b16 %v344, %v343
  %v400 = vpack.c.b16 %v346, %v345
  %v401 = vpack.c.b16 %v348, %v347
  %v402 = vpack.c.b16 %v350, %v349
  %v403 = vpack.c.b16 %v352, %v351
  %v404 = vpack.c.b16 %v354, %v353
  %v405 = vpack.c.b16 %v356, %v355
  %v406 = vpack.c.b16 %v358, %v357
  %455 = vmatprep.subr.bf16.mxu0 0
  %456 = vmatpush1.bf16.msra.mxu0 %v359
  %457 = vmatprep.subr.bf16.mxu0 0
  %458 = vmatpush1.bf16.msra.mxu0 %v360
  %459 = vmatprep.subr.bf16.mxu0 0
  %460 = vmatpush1.bf16.msra.mxu0 %v361
  %461 = vmatprep.subr.bf16.mxu0 0
  %462 = vmatpush1.bf16.msra.mxu0 %v362
  %463 = vmatprep.subr.bf16.mxu0 0
  %464 = vmatpush1.bf16.msra.mxu0 %v363
  %465 = vmatprep.subr.bf16.mxu0 0
  %466 = vmatpush1.bf16.msra.mxu0 %v364
  %467 = vmatprep.subr.bf16.mxu0 0
  %468 = vmatpush1.bf16.msra.mxu0 %v365
  %469 = vmatprep.subr.bf16.mxu0 0
  %470 = vmatpush1.bf16.msra.mxu0 %v366
  %471 = vmatprep.subr.bf16.mxu0 0
  %472 = vmatpush1.bf16.msra.mxu0 %v367
  %473 = vmatprep.subr.bf16.mxu0 0
  %474 = vmatpush1.bf16.msra.mxu0 %v368
  %475 = vmatprep.subr.bf16.mxu0 0
  %476 = vmatpush1.bf16.msra.mxu0 %v369
  %477 = vmatprep.subr.bf16.mxu0 0
  %478 = vmatpush1.bf16.msra.mxu0 %v370
  %479 = vmatprep.subr.bf16.mxu0 0
  %480 = vmatpush1.bf16.msra.mxu0 %v371
  %481 = vmatprep.subr.bf16.mxu0 0
  %482 = vmatpush1.bf16.msra.mxu0 %v372
  %483 = vmatprep.subr.bf16.mxu0 0
  %484 = vmatpush1.bf16.msra.mxu0 %v373
  %485 = vmatprep.subr.bf16.mxu0 0
  %486 = vmatpush1.bf16.msra.mxu0 %v374
  %487 = vmatprep.mubr.bf16.mxu0 %v156
  %488 = vmatmul.mubr.bf16.gmra.mrb[0].mxu0 %v155
  %v489 = vpop.f32.mrb[0].mxu0
  %v490 = vadd.f32 %v135, %v489
  %v491 = vpop.f32.mrb[0].mxu0
  %v492 = vpop.f32.mrb[0].mxu0
  %v493 = vadd.f32 %v135, %v492
  %v494 = vpop.f32.mrb[0].mxu0
  %495 = vdwg.mxu0
  %496 = vmatprep.subr.bf16.mxu0 0
  %497 = vmatpush1.bf16.msra.mxu0 %v375
  %498 = vmatprep.subr.bf16.mxu0 0
  %499 = vmatpush1.bf16.msra.mxu0 %v376
  %500 = vmatprep.subr.bf16.mxu0 0
  %501 = vmatpush1.bf16.msra.mxu0 %v377
  %502 = vmatprep.subr.bf16.mxu0 0
  %503 = vmatpush1.bf16.msra.mxu0 %v378
  %504 = vmatprep.subr.bf16.mxu0 0
  %505 = vmatpush1.bf16.msra.mxu0 %v379
  %506 = vmatprep.subr.bf16.mxu0 0
  %507 = vmatpush1.bf16.msra.mxu0 %v380
  %508 = vmatprep.subr.bf16.mxu0 0
  %509 = vmatpush1.bf16.msra.mxu0 %v381
  %510 = vmatprep.subr.bf16.mxu0 0
  %511 = vmatpush1.bf16.msra.mxu0 %v382
  %512 = vmatprep.subr.bf16.mxu0 0
  %513 = vmatpush1.bf16.msra.mxu0 %v383
  %514 = vmatprep.subr.bf16.mxu0 0
  %515 = vmatpush1.bf16.msra.mxu0 %v384
  %516 = vmatprep.subr.bf16.mxu0 0
  %517 = vmatpush1.bf16.msra.mxu0 %v385
  %518 = vmatprep.subr.bf16.mxu0 0
  %519 = vmatpush1.bf16.msra.mxu0 %v386
  %520 = vmatprep.subr.bf16.mxu0 0
  %521 = vmatpush1.bf16.msra.mxu0 %v387
  %522 = vmatprep.subr.bf16.mxu0 0
  %523 = vmatpush1.bf16.msra.mxu0 %v388
  %524 = vmatprep.subr.bf16.mxu0 0
  %525 = vmatpush1.bf16.msra.mxu0 %v389
  %526 = vmatprep.subr.bf16.mxu0 0
  %527 = vmatpush1.bf16.msra.mxu0 %v390
  %528 = vmatprep.mubr.bf16.mxu0 %v158
  %529 = vmatmul.mubr.bf16.gmra.mrb[0].mxu0 %v157
  %v530 = vpop.f32.mrb[0].mxu0
  %v531 = vadd.f32 %v490, %v530
  %v532 = vpop.f32.mrb[0].mxu0
  %v533 = vpop.f32.mrb[0].mxu0
  %v534 = vadd.f32 %v493, %v533
  %v535 = vpop.f32.mrb[0].mxu0
  %536 = vdwg.mxu0
  %537 = vmatprep.subr.bf16.mxu0 0
  %538 = vmatpush1.bf16.msra.mxu0 %v391
  %539 = vmatprep.subr.bf16.mxu0 0
  %540 = vmatpush1.bf16.msra.mxu0 %v392
  %541 = vmatprep.subr.bf16.mxu0 0
  %542 = vmatpush1.bf16.msra.mxu0 %v393
  %543 = vmatprep.subr.bf16.mxu0 0
  %544 = vmatpush1.bf16.msra.mxu0 %v394
  %545 = vmatprep.subr.bf16.mxu0 0
  %546 = vmatpush1.bf16.msra.mxu0 %v395
  %547 = vmatprep.subr.bf16.mxu0 0
  %548 = vmatpush1.bf16.msra.mxu0 %v396
  %549 = vmatprep.subr.bf16.mxu0 0
  %550 = vmatpush1.bf16.msra.mxu0 %v397
  %551 = vmatprep.subr.bf16.mxu0 0
  %552 = vmatpush1.bf16.msra.mxu0 %v398
  %553 = vmatprep.subr.bf16.mxu0 0
  %554 = vmatpush1.bf16.msra.mxu0 %v399
  %555 = vmatprep.subr.bf16.mxu0 0
  %556 = vmatpush1.bf16.msra.mxu0 %v400
  %557 = vmatprep.subr.bf16.mxu0 0
  %558 = vmatpush1.bf16.msra.mxu0 %v401
  %559 = vmatprep.subr.bf16.mxu0 0
  %560 = vmatpush1.bf16.msra.mxu0 %v402
  %561 = vmatprep.subr.bf16.mxu0 0
  %562 = vmatpush1.bf16.msra.mxu0 %v403
  %563 = vmatprep.subr.bf16.mxu0 0
  %564 = vmatpush1.bf16.msra.mxu0 %v404
  %565 = vmatprep.subr.bf16.mxu0 0
  %566 = vmatpush1.bf16.msra.mxu0 %v405
  %567 = vmatprep.subr.bf16.mxu0 0
  %568 = vmatpush1.bf16.msra.mxu0 %v406
  %569 = vmatprep.mubr.bf16.mxu0 %v160
  %570 = vmatmul.mubr.bf16.gmra.mrb[0].mxu0 %v159
  %v571 = vpop.f32.mrb[0].mxu0
  %v572 = vadd.f32 %v531, %v571
  %v573 = vpop.f32.mrb[0].mxu0
  %v574 = vpop.f32.mrb[0].mxu0
  %v575 = vadd.f32 %v534, %v574
  %v576 = vpop.f32.mrb[0].mxu0
  %577 = vdwg.mxu0
  %v578 = vld [vmem:[%s4] sm:$0x3]
  %v579 = vlaneseq
  %v580 = vshrl.u32 %v579, 7
  %v581 = vsub.s32 0, %v580
  %v582 = vrot.slane %v578, %v581
  %v583 = vmul.f32 %v26, %v582
  %v584 = vmul.f32 %v27, %v582
  %vm585 = vcmask 261120
  %v586 = vsel %vm585, %v583, 0.0
  %587 = vadd.xlane.f32.xlu0 %v586
  %v588 = vpop.xlane.xlu0 %587
  %v589 = vsel %vm585, %v584, 0.0
  %590 = vadd.xlane.f32.xlu0 %v589
  %v591 = vpop.xlane.xlu0 %590
  %v592 = vlaneseq
  %v593 = vshrl.u32 %v592, 7
  %v594 = vsub.s32 1, %v593
  %v595 = vrot.slane %v578, %v594
  %v596 = vmul.f32 %v572, %v595
  %v597 = vmul.f32 %v575, %v595
  %v598 = vsel %vm585, %v596, 0.0
  %599 = vadd.xlane.f32.xlu0 %v598
  %v600 = vpop.xlane.xlu0 %599
  %v601 = vsel %vm585, %v597, 0.0
  %602 = vadd.xlane.f32.xlu0 %v601
  %v603 = vpop.xlane.xlu0 %602
  %v604 = vadd.f32 %v588, %v600
  %v605 = vadd.f32 %v591, %v603
  %v606 = vld [vmem:[#allocation2] sm:$0x1]
  %v608 = vlaneseq
  %v609 = vshrl.u32 %v608, 7
  %v610 = vsub.s32 0, %v609
  %v611 = vrot.slane %v606, %v610
  %v613 = vadd.f32 %v604, %v611
  %v614 = vadd.f32 %v605, %v611
  %v615 = vxor.u32 %v613, 2147483648
  %v616 = vxor.u32 %v614, 2147483648
  %v617 = vmul.f32 %v615, 1.442695
  %v618 = vpow.pop %v617
  %v619 = vmul.f32 %v616, 1.442695
  %v620 = vpow.pop %v619
  %v621 = vadd.f32 %v618, 1.0
  %v622 = vadd.f32 %v620, 1.0
  %v623 = vrcp.pop %v621
  %v624 = vmul.f32 1.0, %v623
  %v625 = vrcp.pop %v622
  %v626 = vmul.f32 1.0, %v625
  %628 = vset.pattern.permute.xlu0 0
  %629 = vperm.xlu0 %628, %v624
  %v630 = vpop.permute.xlu0 %629
  %633 = vset.pattern.permute.xlu0 0
  %634 = vperm.xlu0 %633, %v626
  %v635 = vpop.permute.xlu0 %634
  %v637 = vmul.f32 %v630, %v26
  %v638 = vmul.f32 %v635, %v27
  %v639 = vsub.f32 1.0, %v624
  %v640 = vsub.f32 1.0, %v626
  %642 = vset.pattern.permute.xlu0 0
  %643 = vperm.xlu0 %642, %v639
  %v644 = vpop.permute.xlu0 %643
  %647 = vset.pattern.permute.xlu0 0
  %648 = vperm.xlu0 %647, %v640
  %v649 = vpop.permute.xlu0 %648
  %v651 = vmul.f32 %v644, %v572
  %v652 = vmul.f32 %v649, %v575
  %v653 = vadd.f32 %v637, %v651
  %v654 = vadd.f32 %v638, %v652
  %655 = vst.msk [vmem:[%s6] sm:$0xff] %vm585, %v653
  %656 = vst.msk [vmem:[%s6 + $0x8] sm:$0xff] %vm585, %v654
  // Predicated region
  $region26: #{time_model_forward.4} parent=0 // pred_check
    _
  $region27: #{time_model_forward.4} parent=0 // pred_check_branch
    %658 = sbr.rel (0) target = $region29
  $region28: #{time_model_forward.4} parent=0 // pred_region
    _
  $region29: #{time_model_forward.4} parent=0 // pred_fallthru
    _
  // Predicated region
  $region30: #{time_model_forward.4} parent=0 // pred_check
    _
  $region31: #{time_model_forward.4} parent=0 // pred_check_branch
    %660 = sbr.rel (0) target = $region33
  $region32: #{time_model_forward.4} parent=0 // pred_region
    _
  $region33: #{time_model_forward.4} parent=0 // pred_fallthru
    _

// kernel: time_model_forward.3
$region0: #{time_model_forward.3}
  #allocation0 [shape = 'u32[]', space=smem, size = 0x4, offset = 0x4, fixed_abs, tag = 'smem constant byte address 0x4 - core index']
  #allocation1 [shape = 'u32[144,128]{1,0:T(1,128)}', space=vmem, size = 0x12000, scoped, tag = 'internal scratch']
  #allocation2 [shape = 'f32[2,8,32]{2,1,0:T(8,128)}', space=vmem, size = 0x2000, scoped, tag = 'scratch operand']
  #allocation3 [shape = 'f32[2,8,8]{2,1,0:T(8,128)}', space=vmem, size = 0x2000, scoped, tag = 'scratch operand']
  %s0 = inlined_call_operand.vmem [shape: s32[2,8], index: 0, kind: input, shape index: {}]
  %s1 = inlined_call_operand.vmem [shape: f32[2,8,32], index: 1, kind: input, shape index: {}, may-alias: {1,2}]
  %s2 = inlined_call_operand.vmem [shape: f32[2,8,32], index: 2, kind: input, shape index: {}, may-alias: {1,2}]
  %s3 = inlined_call_operand.vmem [shape: f32[2,8], index: 3, kind: input, shape index: {}]
  %s4 = inlined_call_operand.vmem [shape: bf16[2,3,32,32], index: 4, kind: input, shape index: {}]
  %s5 = inlined_call_operand.vmem [shape: f32[2,3,32], index: 5, kind: input, shape index: {}]
  %s6 = inlined_call_operand.vmem [shape: bf16[2,32,32], index: 6, kind: input, shape index: {}]
  %s7 = inlined_call_operand.vmem [shape: f32[2,1,32], index: 7, kind: input, shape index: {}]
  %s8 = inlined_call_operand.vmem [shape: f32[2,2,32], index: 8, kind: input, shape index: {}]
  %s9 = inlined_call_operand.vmem [shape: bf16[2,32,64], index: 9, kind: input, shape index: {}]
  %s10 = inlined_call_operand.vmem [shape: f32[2,1,64], index: 10, kind: input, shape index: {}]
  %s11 = inlined_call_operand.vmem [shape: bf16[2,64,32], index: 11, kind: input, shape index: {}]
  %s12 = inlined_call_operand.vmem [shape: f32[2,1,32], index: 12, kind: input, shape index: {}]
  %s13 = inlined_call_operand.vmem [shape: f32[2,2,32], index: 13, kind: input, shape index: {}]
  %s14 = inlined_call_operand.vmem [shape: f32[2,8,32], index: 14, kind: output, shape index: {}]
  %s15 = sld [smem:[#allocation0]]
  $region97: #{time_model_forward.3} parent=0
    _
  %s17 = ssub.s32 1, %s15
  %s18 = scalar_select 0, %s17, %s15
  loop: start=0, step=1, limit=4
  $region2: #{time_model_forward.3} parent=0 // loop_pre_header
    _
  $region3: #{time_model_forward.3} parent=0 // loop_header
    %s20 = sphi 0, %s24
    %p21 = scmp.ge.s32.totalorder %s20, 4
    %s27 = sphi 0, %s39
    %s28 = sphi 0, %s35
    %s29 = sphi 0, %s27
    %s30 = sphi 0, %s28
    %s31 = sphi 0, %s29
    %s32 = sphi 0, %s30
    %s42 = sphi 0, %s44
    %s45 = sphi 0, %s42
    %s46 = sphi 0, %s45
    %s62 = sphi 0, %s46
    %s68 = sphi 0, %s70
    %s71 = sphi 0, %s68
    %s72 = sphi 0, %s71
    %s88 = sphi 0, %s72
    %s94 = sphi 0, %s96
    %s97 = sphi 0, %s94
    %s98 = sphi 0, %s97
    %s114 = sphi 0, %s98
    %s120 = sphi 0, %s122
    %s123 = sphi 0, %s120
    %s124 = sphi 0, %s123
    %s140 = sphi 0, %s124
    %s146 = sphi 0, %s148
    %s149 = sphi 0, %s146
    %s150 = sphi 0, %s149
    %s166 = sphi 0, %s150
    %s172 = sphi 0, %s174
    %s175 = sphi 0, %s172
    %s176 = sphi 0, %s175
    %s192 = sphi 0, %s176
    %s198 = sphi 0, %s200
    %s201 = sphi 0, %s198
    %s202 = sphi 0, %s201
    %s218 = sphi 0, %s202
    %s224 = sphi 0, %s226
    %s227 = sphi 0, %s224
    %s228 = sphi 0, %s227
    %s244 = sphi 0, %s228
    %s250 = sphi 0, %s252
    %s253 = sphi 0, %s250
    %s254 = sphi 0, %s253
    %s270 = sphi 0, %s254
    %s276 = sphi 0, %s278
    %s279 = sphi 0, %s276
    %s280 = sphi 0, %s279
    %s296 = sphi 0, %s280
    %s302 = sphi 0, %s304
    %s305 = sphi 0, %s302
    %s306 = sphi 0, %s305
    %s322 = sphi 0, %s306
    %s328 = sphi 0, %s330
    %s331 = sphi 0, %s328
    %s332 = sphi 0, %s331
    %s348 = sphi 0, %s332
    %s354 = sphi 0, %s356
    %s357 = sphi 0, %s354
    %s358 = sphi 0, %s357
    %s374 = sphi 0, %s358
    %s380 = sphi 0, %s382
    %s383 = sphi 0, %s380
    %s384 = sphi 0, %s383
    %s400 = sphi 0, %s384
    %s406 = sphi 0, %s408
    %s409 = sphi 0, %s406
    %s410 = sphi 0, %s409
    %s426 = sphi 0, %s410
  $region4: #{time_model_forward.3} parent=0 // loop_header_branch
    %23 = sbr.rel (%p21) target = $region8
  $region5: #{time_model_forward.3} parent=0 // loop_body
    %s25 = ssub.s32 %s20, 1
    %s26 = ssub.s32 %s20, 2
    %s33 = sadd.s32 1, %s28
    %p34 = scmp.ge.s32.totalorder %s33, 2
    %s35 = scalar_select %p34, 0, %s33
    %s36 = sadd.s32 1, %s27
    %s37 = scalar_select %p34, %s36, %s27
    %p38 = scmp.ge.s32.totalorder %s37, 1
    %s39 = scalar_select %p38, 0, %s37
    %s40 = ssub.s32 %s27, %s39
    %p41 = scmp.eq.s32.totalorder %s40, 0
    %s43 = sadd.s32 %s42, 1
    %s44 = scalar_select %p41, %s42, %s43
    %p47 = pneg %p41
    %p48 = scmp.eq.s32.totalorder %s20, 1
    %p49 = por %p47, %p48
    %p50 = scmp.ne.s32.totalorder %s42, %s45
    %p51 = scmp.eq.s32.totalorder %s20, 0
    %p52 = por %p50, %p51
    %p53 = scmp.ne.s32.totalorder %s42, %s45
    %p54 = scmp.eq.s32.totalorder %s25, 1
    %p55 = por %p53, %p54
    %p56 = scmp.ne.s32.totalorder %s45, %s46
    %p57 = scmp.eq.s32.totalorder %s25, 0
    %p58 = por %p56, %p57
    %p59 = scmp.ne.s32.totalorder %s45, %s46
    %p60 = scmp.eq.s32.totalorder %s26, 1
    %p61 = por %p59, %p60
    %p63 = scmp.ne.s32.totalorder %s46, %s62
    %p64 = scmp.eq.s32.totalorder %s26, 0
    %p65 = por %p63, %p64
    %s66 = ssub.s32 %s27, %s39
    %p67 = scmp.eq.s32.totalorder %s66, 0
    %s69 = sadd.s32 %s68, 1
    %s70 = scalar_select %p67, %s68, %s69
    %p73 = pneg %p67
    %p74 = scmp.eq.s32.totalorder %s20, 1
    %p75 = por %p73, %p74
    %p76 = scmp.ne.s32.totalorder %s68, %s71
    %p77 = scmp.eq.s32.totalorder %s20, 0
    %p78 = por %p76, %p77
    %p79 = scmp.ne.s32.totalorder %s68, %s71
    %p80 = scmp.eq.s32.totalorder %s25, 1
    %p81 = por %p79, %p80
    %p82 = scmp.ne.s32.totalorder %s71, %s72
    %p83 = scmp.eq.s32.totalorder %s25, 0
    %p84 = por %p82, %p83
    %p85 = scmp.ne.s32.totalorder %s71, %s72
    %p86 = scmp.eq.s32.totalorder %s26, 1
    %p87 = por %p85, %p86
    %p89 = scmp.ne.s32.totalorder %s72, %s88
    %p90 = scmp.eq.s32.totalorder %s26, 0
    %p91 = por %p89, %p90
    %s92 = ssub.s32 %s27, %s39
    %p93 = scmp.eq.s32.totalorder %s92, 0
    %s95 = sadd.s32 %s94, 1
    %s96 = scalar_select %p93, %s94, %s95
    %p99 = pneg %p93
    %p100 = scmp.eq.s32.totalorder %s20, 1
    %p101 = por %p99, %p100
    %p102 = scmp.ne.s32.totalorder %s94, %s97
    %p103 = scmp.eq.s32.totalorder %s20, 0
    %p104 = por %p102, %p103
    %p105 = scmp.ne.s32.totalorder %s94, %s97
    %p106 = scmp.eq.s32.totalorder %s25, 1
    %p107 = por %p105, %p106
    %p108 = scmp.ne.s32.totalorder %s97, %s98
    %p109 = scmp.eq.s32.totalorder %s25, 0
    %p110 = por %p108, %p109
    %p111 = scmp.ne.s32.totalorder %s97, %s98
    %p112 = scmp.eq.s32.totalorder %s26, 1
    %p113 = por %p111, %p112
    %p115 = scmp.ne.s32.totalorder %s98, %s114
    %p116 = scmp.eq.s32.totalorder %s26, 0
    %p117 = por %p115, %p116
    %s118 = ssub.s32 %s27, %s39
    %p119 = scmp.eq.s32.totalorder %s118, 0
    %s121 = sadd.s32 %s120, 1
    %s122 = scalar_select %p119, %s120, %s121
    %p125 = pneg %p119
    %p126 = scmp.eq.s32.totalorder %s20, 1
    %p127 = por %p125, %p126
    %p128 = scmp.ne.s32.totalorder %s120, %s123
    %p129 = scmp.eq.s32.totalorder %s20, 0
    %p130 = por %p128, %p129
    %p131 = scmp.ne.s32.totalorder %s120, %s123
    %p132 = scmp.eq.s32.totalorder %s25, 1
    %p133 = por %p131, %p132
    %p134 = scmp.ne.s32.totalorder %s123, %s124
    %p135 = scmp.eq.s32.totalorder %s25, 0
    %p136 = por %p134, %p135
    %p137 = scmp.ne.s32.totalorder %s123, %s124
    %p138 = scmp.eq.s32.totalorder %s26, 1
    %p139 = por %p137, %p138
    %p141 = scmp.ne.s32.totalorder %s124, %s140
    %p142 = scmp.eq.s32.totalorder %s26, 0
    %p143 = por %p141, %p142
    %s144 = ssub.s32 %s28, %s35
    %p145 = scmp.eq.s32.totalorder %s144, 0
    %s147 = sadd.s32 %s146, 1
    %s148 = scalar_select %p145, %s146, %s147
    %p151 = pneg %p145
    %p152 = scmp.eq.s32.totalorder %s20, 1
    %p153 = por %p151, %p152
    %p154 = scmp.ne.s32.totalorder %s146, %s149
    %p155 = scmp.eq.s32.totalorder %s20, 0
    %p156 = por %p154, %p155
    %p157 = scmp.ne.s32.totalorder %s146, %s149
    %p158 = scmp.eq.s32.totalorder %s25, 1
    %p159 = por %p157, %p158
    %p160 = scmp.ne.s32.totalorder %s149, %s150
    %p161 = scmp.eq.s32.totalorder %s25, 0
    %p162 = por %p160, %p161
    %p163 = scmp.ne.s32.totalorder %s149, %s150
    %p164 = scmp.eq.s32.totalorder %s26, 1
    %p165 = por %p163, %p164
    %p167 = scmp.ne.s32.totalorder %s150, %s166
    %p168 = scmp.eq.s32.totalorder %s26, 0
    %p169 = por %p167, %p168
    %s170 = ssub.s32 %s28, %s35
    %p171 = scmp.eq.s32.totalorder %s170, 0
    %s173 = sadd.s32 %s172, 1
    %s174 = scalar_select %p171, %s172, %s173
    %p177 = pneg %p171
    %p178 = scmp.eq.s32.totalorder %s20, 1
    %p179 = por %p177, %p178
    %p180 = scmp.ne.s32.totalorder %s172, %s175
    %p181 = scmp.eq.s32.totalorder %s20, 0
    %p182 = por %p180, %p181
    %p183 = scmp.ne.s32.totalorder %s172, %s175
    %p184 = scmp.eq.s32.totalorder %s25, 1
    %p185 = por %p183, %p184
    %p186 = scmp.ne.s32.totalorder %s175, %s176
    %p187 = scmp.eq.s32.totalorder %s25, 0
    %p188 = por %p186, %p187
    %p189 = scmp.ne.s32.totalorder %s175, %s176
    %p190 = scmp.eq.s32.totalorder %s26, 1
    %p191 = por %p189, %p190
    %p193 = scmp.ne.s32.totalorder %s176, %s192
    %p194 = scmp.eq.s32.totalorder %s26, 0
    %p195 = por %p193, %p194
    %s196 = ssub.s32 %s28, %s35
    %p197 = scmp.eq.s32.totalorder %s196, 0
    %s199 = sadd.s32 %s198, 1
    %s200 = scalar_select %p197, %s198, %s199
    %p203 = pneg %p197
    %p204 = scmp.eq.s32.totalorder %s20, 1
    %p205 = por %p203, %p204
    %p206 = scmp.ne.s32.totalorder %s198, %s201
    %p207 = scmp.eq.s32.totalorder %s20, 0
    %p208 = por %p206, %p207
    %p209 = scmp.ne.s32.totalorder %s198, %s201
    %p210 = scmp.eq.s32.totalorder %s25, 1
    %p211 = por %p209, %p210
    %p212 = scmp.ne.s32.totalorder %s201, %s202
    %p213 = scmp.eq.s32.totalorder %s25, 0
    %p214 = por %p212, %p213
    %p215 = scmp.ne.s32.totalorder %s201, %s202
    %p216 = scmp.eq.s32.totalorder %s26, 1
    %p217 = por %p215, %p216
    %p219 = scmp.ne.s32.totalorder %s202, %s218
    %p220 = scmp.eq.s32.totalorder %s26, 0
    %p221 = por %p219, %p220
    %s222 = ssub.s32 %s28, %s35
    %p223 = scmp.eq.s32.totalorder %s222, 0
    %s225 = sadd.s32 %s224, 1
    %s226 = scalar_select %p223, %s224, %s225
    %p229 = pneg %p223
    %p230 = scmp.eq.s32.totalorder %s20, 1
    %p231 = por %p229, %p230
    %p232 = scmp.ne.s32.totalorder %s224, %s227
    %p233 = scmp.eq.s32.totalorder %s20, 0
    %p234 = por %p232, %p233
    %p235 = scmp.ne.s32.totalorder %s224, %s227
    %p236 = scmp.eq.s32.totalorder %s25, 1
    %p237 = por %p235, %p236
    %p238 = scmp.ne.s32.totalorder %s227, %s228
    %p239 = scmp.eq.s32.totalorder %s25, 0
    %p240 = por %p238, %p239
    %p241 = scmp.ne.s32.totalorder %s227, %s228
    %p242 = scmp.eq.s32.totalorder %s26, 1
    %p243 = por %p241, %p242
    %p245 = scmp.ne.s32.totalorder %s228, %s244
    %p246 = scmp.eq.s32.totalorder %s26, 0
    %p247 = por %p245, %p246
    %s248 = ssub.s32 %s28, %s35
    %p249 = scmp.eq.s32.totalorder %s248, 0
    %s251 = sadd.s32 %s250, 1
    %s252 = scalar_select %p249, %s250, %s251
    %p255 = pneg %p249
    %p256 = scmp.eq.s32.totalorder %s20, 1
    %p257 = por %p255, %p256
    %p258 = scmp.ne.s32.totalorder %s250, %s253
    %p259 = scmp.eq.s32.totalorder %s20, 0
    %p260 = por %p258, %p259
    %p261 = scmp.ne.s32.totalorder %s250, %s253
    %p262 = scmp.eq.s32.totalorder %s25, 1
    %p263 = por %p261, %p262
    %p264 = scmp.ne.s32.totalorder %s253, %s254
    %p265 = scmp.eq.s32.totalorder %s25, 0
    %p266 = por %p264, %p265
    %p267 = scmp.ne.s32.totalorder %s253, %s254
    %p268 = scmp.eq.s32.totalorder %s26, 1
    %p269 = por %p267, %p268
    %p271 = scmp.ne.s32.totalorder %s254, %s270
    %p272 = scmp.eq.s32.totalorder %s26, 0
    %p273 = por %p271, %p272
    %s274 = ssub.s32 %s28, %s35
    %p275 = scmp.eq.s32.totalorder %s274, 0
    %s277 = sadd.s32 %s276, 1
    %s278 = scalar_select %p275, %s276, %s277
    %p281 = pneg %p275
    %p282 = scmp.eq.s32.totalorder %s20, 1
    %p283 = por %p281, %p282
    %p284 = scmp.ne.s32.totalorder %s276, %s279
    %p285 = scmp.eq.s32.totalorder %s20, 0
    %p286 = por %p284, %p285
    %p287 = scmp.ne.s32.totalorder %s276, %s279
    %p288 = scmp.eq.s32.totalorder %s25, 1
    %p289 = por %p287, %p288
    %p290 = scmp.ne.s32.totalorder %s279, %s280
    %p291 = scmp.eq.s32.totalorder %s25, 0
    %p292 = por %p290, %p291
    %p293 = scmp.ne.s32.totalorder %s279, %s280
    %p294 = scmp.eq.s32.totalorder %s26, 1
    %p295 = por %p293, %p294
    %p297 = scmp.ne.s32.totalorder %s280, %s296
    %p298 = scmp.eq.s32.totalorder %s26, 0
    %p299 = por %p297, %p298
    %s300 = ssub.s32 %s28, %s35
    %p301 = scmp.eq.s32.totalorder %s300, 0
    %s303 = sadd.s32 %s302, 1
    %s304 = scalar_select %p301, %s302, %s303
    %p307 = pneg %p301
    %p308 = scmp.eq.s32.totalorder %s20, 1
    %p309 = por %p307, %p308
    %p310 = scmp.ne.s32.totalorder %s302, %s305
    %p311 = scmp.eq.s32.totalorder %s20, 0
    %p312 = por %p310, %p311
    %p313 = scmp.ne.s32.totalorder %s302, %s305
    %p314 = scmp.eq.s32.totalorder %s25, 1
    %p315 = por %p313, %p314
    %p316 = scmp.ne.s32.totalorder %s305, %s306
    %p317 = scmp.eq.s32.totalorder %s25, 0
    %p318 = por %p316, %p317
    %p319 = scmp.ne.s32.totalorder %s305, %s306
    %p320 = scmp.eq.s32.totalorder %s26, 1
    %p321 = por %p319, %p320
    %p323 = scmp.ne.s32.totalorder %s306, %s322
    %p324 = scmp.eq.s32.totalorder %s26, 0
    %p325 = por %p323, %p324
    %s326 = ssub.s32 %s28, %s35
    %p327 = scmp.eq.s32.totalorder %s326, 0
    %s329 = sadd.s32 %s328, 1
    %s330 = scalar_select %p327, %s328, %s329
    %p333 = pneg %p327
    %p334 = scmp.eq.s32.totalorder %s20, 1
    %p335 = por %p333, %p334
    %p336 = scmp.ne.s32.totalorder %s328, %s331
    %p337 = scmp.eq.s32.totalorder %s20, 0
    %p338 = por %p336, %p337
    %p339 = scmp.ne.s32.totalorder %s328, %s331
    %p340 = scmp.eq.s32.totalorder %s25, 1
    %p341 = por %p339, %p340
    %p342 = scmp.ne.s32.totalorder %s331, %s332
    %p343 = scmp.eq.s32.totalorder %s25, 0
    %p344 = por %p342, %p343
    %p345 = scmp.ne.s32.totalorder %s331, %s332
    %p346 = scmp.eq.s32.totalorder %s26, 1
    %p347 = por %p345, %p346
    %p349 = scmp.ne.s32.totalorder %s332, %s348
    %p350 = scmp.eq.s32.totalorder %s26, 0
    %p351 = por %p349, %p350
    %s352 = ssub.s32 %s28, %s35
    %p353 = scmp.eq.s32.totalorder %s352, 0
    %s355 = sadd.s32 %s354, 1
    %s356 = scalar_select %p353, %s354, %s355
    %p359 = pneg %p353
    %p360 = scmp.eq.s32.totalorder %s20, 1
    %p361 = por %p359, %p360
    %p362 = scmp.ne.s32.totalorder %s354, %s357
    %p363 = scmp.eq.s32.totalorder %s20, 0
    %p364 = por %p362, %p363
    %p365 = scmp.ne.s32.totalorder %s354, %s357
    %p366 = scmp.eq.s32.totalorder %s25, 1
    %p367 = por %p365, %p366
    %p368 = scmp.ne.s32.totalorder %s357, %s358
    %p369 = scmp.eq.s32.totalorder %s25, 0
    %p370 = por %p368, %p369
    %p371 = scmp.ne.s32.totalorder %s357, %s358
    %p372 = scmp.eq.s32.totalorder %s26, 1
    %p373 = por %p371, %p372
    %p375 = scmp.ne.s32.totalorder %s358, %s374
    %p376 = scmp.eq.s32.totalorder %s26, 0
    %p377 = por %p375, %p376
    %s378 = ssub.s32 %s28, %s35
    %p379 = scmp.eq.s32.totalorder %s378, 0
    %s381 = sadd.s32 %s380, 1
    %s382 = scalar_select %p379, %s380, %s381
    %p385 = pneg %p379
    %p386 = scmp.eq.s32.totalorder %s20, 1
    %p387 = por %p385, %p386
    %p388 = scmp.ne.s32.totalorder %s380, %s383
    %p389 = scmp.eq.s32.totalorder %s20, 0
    %p390 = por %p388, %p389
    %p391 = scmp.ne.s32.totalorder %s380, %s383
    %p392 = scmp.eq.s32.totalorder %s25, 1
    %p393 = por %p391, %p392
    %p394 = scmp.ne.s32.totalorder %s383, %s384
    %p395 = scmp.eq.s32.totalorder %s25, 0
    %p396 = por %p394, %p395
    %p397 = scmp.ne.s32.totalorder %s383, %s384
    %p398 = scmp.eq.s32.totalorder %s26, 1
    %p399 = por %p397, %p398
    %p401 = scmp.ne.s32.totalorder %s384, %s400
    %p402 = scmp.eq.s32.totalorder %s26, 0
    %p403 = por %p401, %p402
    %s404 = ssub.s32 %s27, %s39
    %p405 = scmp.eq.s32.totalorder %s404, 0
    %s407 = sadd.s32 %s406, 1
    %s408 = scalar_select %p405, %s406, %s407
    %p411 = pneg %p405
    %p412 = scmp.eq.s32.totalorder %s20, 1
    %p413 = por %p411, %p412
    %p414 = scmp.ne.s32.totalorder %s406, %s409
    %p415 = scmp.eq.s32.totalorder %s20, 0
    %p416 = por %p414, %p415
    %p417 = scmp.ne.s32.totalorder %s406, %s409
    %p418 = scmp.eq.s32.totalorder %s25, 1
    %p419 = por %p417, %p418
    %p420 = scmp.ne.s32.totalorder %s409, %s410
    %p421 = scmp.eq.s32.totalorder %s25, 0
    %p422 = por %p420, %p421
    %p423 = scmp.ne.s32.totalorder %s409, %s410
    %p424 = scmp.eq.s32.totalorder %s26, 1
    %p425 = por %p423, %p424
    %p427 = scmp.ne.s32.totalorder %s410, %s426
    %p428 = scmp.eq.s32.totalorder %s26, 0
    %p429 = por %p427, %p428
    %p430 = scmp.le.s32.totalorder 1, %s20
    %p431 = scmp.lt.s32.totalorder %s20, 3
    %p432 = pnand %p430, %p431
    %p433 = pneg %p432
    // Predicated region
    $region9: #{time_model_forward.3} parent=5 // pred_check
      _
    $region10: #{time_model_forward.3} parent=5 // pred_check_branch
      %435 = sbr.rel (%p432) target = $region12
    $region11: #{time_model_forward.3} parent=5 // pred_region
      %s436 = ssub.s32 %s20, 1
      // Predicated region
      $region13: #{time_model_forward.3} parent=11 // pred_check
        %p437 = pneg %p58
      $region14: #{time_model_forward.3} parent=11 // pred_check_branch
        %439 = sbr.rel (%p437) target = $region16
      $region15: #{time_model_forward.3} parent=11 // pred_region
        %p440 = scmp.lt.s32.totalorder %s29, 0
        %s441 = scalar_select %p440, %s29, 0
        %s442 = smul.addr %s441, 2
        %s443 = scalar_lea.vmem %s0, %s442
      $region16: #{time_model_forward.3} parent=11 // pred_fallthru
        _
      // Predicated region
      $region17: #{time_model_forward.3} parent=11 // pred_check
        %p444 = pneg %p84
      $region18: #{time_model_forward.3} parent=11 // pred_check_branch
        %446 = sbr.rel (%p444) target = $region20
      $region19: #{time_model_forward.3} parent=11 // pred_region
        %s447 = smul.u32 2, %s29
        %p448 = scmp.lt.s32.totalorder %s447, 1
        %s449 = scalar_select %p448, %s447, 1
        %s450 = smul.addr %s449, 8
        %s451 = scalar_lea.vmem %s1, %s450
        %s452 = smul.u32 2, %s29
      $region20: #{time_model_forward.3} parent=11 // pred_fallthru
        _
      // Predicated region
      $region21: #{time_model_forward.3} parent=11 // pred_check
        %p453 = pneg %p110
      $region22: #{time_model_forward.3} parent=11 // pred_check_branch
        %455 = sbr.rel (%p453) target = $region24
      $region23: #{time_model_forward.3} parent=11 // pred_region
        %s456 = smul.u32 2, %s29
        %p457 = scmp.lt.s32.totalorder %s456, 1
        %s458 = scalar_select %p457, %s456, 1
        %s459 = smul.addr %s458, 8
        %s460 = scalar_lea.vmem %s2, %s459
        %s461 = smul.u32 2, %s29
      $region24: #{time_model_forward.3} parent=11 // pred_fallthru
        _
      // Predicated region
      $region25: #{time_model_forward.3} parent=11 // pred_check
        %p462 = pneg %p136
      $region26: #{time_model_forward.3} parent=11 // pred_check_branch
        %464 = sbr.rel (%p462) target = $region28
      $region27: #{time_model_forward.3} parent=11 // pred_region
        %p465 = scmp.lt.s32.totalorder %s29, 0
        %s466 = scalar_select %p465, %s29, 0
        %s467 = smul.addr %s466, 2
        %s468 = scalar_lea.vmem %s3, %s467
      $region28: #{time_model_forward.3} parent=11 // pred_fallthru
        _
    $region12: #{time_model_forward.3} parent=5 // pred_fallthru
      _
    %p469 = scmp.lt.s32.totalorder %s20, 2
    // Predicated region
    $region29: #{time_model_forward.3} parent=5 // pred_check
      %p470 = pneg %p469
    $region30: #{time_model_forward.3} parent=5 // pred_check_branch
      %472 = sbr.rel (%p470) target = $region32
    $region31: #{time_model_forward.3} parent=5 // pred_region
      // Predicated region
      $region33: #{time_model_forward.3} parent=31 // pred_check
        %p473 = pneg %p156
      $region34: #{time_model_forward.3} parent=31 // pred_check_branch
        %475 = sbr.rel (%p473) target = $region36
      $region35: #{time_model_forward.3} parent=31 // pred_region
        %p476 = scmp.lt.s32.totalorder %s28, 1
        %s477 = scalar_select %p476, %s28, 1
        %s478 = smul.addr %s477, 12
        %s479 = smul.addr %s478, 4
        %s480 = scalar_lea.vmem %s4, %s479
      $region36: #{time_model_forward.3} parent=31 // pred_fallthru
        _
      // Predicated region
      $region37: #{time_model_forward.3} parent=31 // pred_check
        %p481 = pneg %p182
      $region38: #{time_model_forward.3} parent=31 // pred_check_branch
        %483 = sbr.rel (%p481) target = $region40
      $region39: #{time_model_forward.3} parent=31 // pred_region
        %p484 = scmp.lt.s32.totalorder %s28, 1
        %s485 = scalar_select %p484, %s28, 1
        %s486 = smul.addr %s485, 4
        %s487 = scalar_lea.vmem %s5, %s486
      $region40: #{time_model_forward.3} parent=31 // pred_fallthru
        _
      // Predicated region
      $region41: #{time_model_forward.3} parent=31 // pred_check
        %p488 = pneg %p208
      $region42: #{time_model_forward.3} parent=31 // pred_check_branch
        %490 = sbr.rel (%p488) target = $region44
      $region43: #{time_model_forward.3} parent=31 // pred_region
        %p491 = scmp.lt.s32.totalorder %s28, 1
        %s492 = scalar_select %p491, %s28, 1
        %s493 = smul.addr %s492, 4
        %s494 = smul.addr %s493, 4
        %s495 = scalar_lea.vmem %s6, %s494
      $region44: #{time_model_forward.3} parent=31 // pred_fallthru
        _
      // Predicated region
      $region45: #{time_model_forward.3} parent=31 // pred_check
        %p496 = pneg %p234
      $region46: #{time_model_forward.3} parent=31 // pred_check_branch
        %498 = sbr.rel (%p496) target = $region48
      $region47: #{time_model_forward.3} parent=31 // pred_region
        %p499 = scmp.lt.s32.totalorder %s28, 1
        %s500 = scalar_select %p499, %s28, 1
        %s501 = scalar_lea.vmem %s7, %s500
      $region48: #{time_model_forward.3} parent=31 // pred_fallthru
        _
      // Predicated region
      $region49: #{time_model_forward.3} parent=31 // pred_check
        %p502 = pneg %p260
      $region50: #{time_model_forward.3} parent=31 // pred_check_branch
        %504 = sbr.rel (%p502) target = $region52
      $region51: #{time_model_forward.3} parent=31 // pred_region
        %p505 = scmp.lt.s32.totalorder %s28, 1
        %s506 = scalar_select %p505, %s28, 1
        %s507 = smul.addr %s506, 2
        %s508 = scalar_lea.vmem %s8, %s507
      $region52: #{time_model_forward.3} parent=31 // pred_fallthru
        _
      // Predicated region
      $region53: #{time_model_forward.3} parent=31 // pred_check
        %p509 = pneg %p286
      $region54: #{time_model_forward.3} parent=31 // pred_check_branch
        %511 = sbr.rel (%p509) target = $region56
      $region55: #{time_model_forward.3} parent=31 // pred_region
        %p512 = scmp.lt.s32.totalorder %s28, 1
        %s513 = scalar_select %p512, %s28, 1
        %s514 = smul.addr %s513, 4
        %s515 = smul.addr %s514, 4
        %s516 = scalar_lea.vmem %s9, %s515
      $region56: #{time_model_forward.3} parent=31 // pred_fallthru
        _
      // Predicated region
      $region57: #{time_model_forward.3} parent=31 // pred_check
        %p517 = pneg %p312
      $region58: #{time_model_forward.3} parent=31 // pred_check_branch
        %519 = sbr.rel (%p517) target = $region60
      $region59: #{time_model_forward.3} parent=31 // pred_region
        %p520 = scmp.lt.s32.totalorder %s28, 1
        %s521 = scalar_select %p520, %s28, 1
        %s522 = scalar_lea.vmem %s10, %s521
      $region60: #{time_model_forward.3} parent=31 // pred_fallthru
        _
      // Predicated region
      $region61: #{time_model_forward.3} parent=31 // pred_check
        %p523 = pneg %p338
      $region62: #{time_model_forward.3} parent=31 // pred_check_branch
        %525 = sbr.rel (%p523) target = $region64
      $region63: #{time_model_forward.3} parent=31 // pred_region
        %p526 = scmp.lt.s32.totalorder %s28, 1
        %s527 = scalar_select %p526, %s28, 1
        %s528 = smul.addr %s527, 8
        %s529 = smul.addr %s528, 4
        %s530 = scalar_lea.vmem %s11, %s529
      $region64: #{time_model_forward.3} parent=31 // pred_fallthru
        _
      // Predicated region
      $region65: #{time_model_forward.3} parent=31 // pred_check
        %p531 = pneg %p364
      $region66: #{time_model_forward.3} parent=31 // pred_check_branch
        %533 = sbr.rel (%p531) target = $region68
      $region67: #{time_model_forward.3} parent=31 // pred_region
        %p534 = scmp.lt.s32.totalorder %s28, 1
        %s535 = scalar_select %p534, %s28, 1
        %s536 = scalar_lea.vmem %s12, %s535
      $region68: #{time_model_forward.3} parent=31 // pred_fallthru
        _
      // Predicated region
      $region69: #{time_model_forward.3} parent=31 // pred_check
        %p537 = pneg %p390
      $region70: #{time_model_forward.3} parent=31 // pred_check_branch
        %539 = sbr.rel (%p537) target = $region72
      $region71: #{time_model_forward.3} parent=31 // pred_region
        %p540 = scmp.lt.s32.totalorder %s28, 1
        %s541 = scalar_select %p540, %s28, 1
        %s542 = smul.addr %s541, 2
        %s543 = scalar_lea.vmem %s13, %s542
      $region72: #{time_model_forward.3} parent=31 // pred_fallthru
        _
    $region32: #{time_model_forward.3} parent=5 // pred_fallthru
      _
    %p544 = scmp.le.s32.totalorder 1, %s20
    %p545 = scmp.lt.s32.totalorder %s20, 3
    %p546 = pnand %p544, %p545
    %p547 = pneg %p546
    // Predicated region
    $region73: #{time_model_forward.3} parent=5 // pred_check
      _
    $region74: #{time_model_forward.3} parent=5 // pred_check_branch
      %549 = sbr.rel (%p546) target = $region76
    $region75: #{time_model_forward.3} parent=5 // pred_region
      %s550 = ssub.s32 %s20, 1
      %p551 = scmp.lt.s32.totalorder %s29, 0
      %s552 = scalar_select %p551, %s29, 0
      %s553 = smul.addr %s552, 2
      %s554 = scalar_lea.vmem %s0, %s553
      %p555 = pneg %p58
      %p556 = pneg %p55
      %s557 = smul.u32 2, %s29
      %p558 = scmp.lt.s32.totalorder %s557, 1
      %s559 = scalar_select %p558, %s557, 1
      %s560 = smul.addr %s559, 8
      %s561 = scalar_lea.vmem %s1, %s560
      %p562 = pneg %p84
      %p563 = pneg %p81
      %s564 = smul.u32 2, %s29
      %p565 = scmp.lt.s32.totalorder %s564, 1
      %s566 = scalar_select %p565, %s564, 1
      %s567 = smul.addr %s566, 8
      %s568 = scalar_lea.vmem %s2, %s567
      %p569 = pneg %p110
      %p570 = pneg %p107
      %p571 = scmp.lt.s32.totalorder %s29, 0
      %s572 = scalar_select %p571, %s29, 0
      %s573 = smul.addr %s572, 2
      %s574 = scalar_lea.vmem %s3, %s573
      %p575 = pneg %p136
      %p576 = pneg %p133
      %p577 = scmp.lt.s32.totalorder %s30, 1
      %s578 = scalar_select %p577, %s30, 1
      %s579 = smul.addr %s578, 12
      %s580 = smul.addr %s579, 4
      %s581 = scalar_lea.vmem %s4, %s580
      %p582 = pneg %p162
      %p583 = pneg %p159
      %p584 = scmp.lt.s32.totalorder %s30, 1
      %s585 = scalar_select %p584, %s30, 1
      %s586 = smul.addr %s585, 4
      %s587 = scalar_lea.vmem %s5, %s586
      %p588 = pneg %p188
      %p589 = pneg %p185
      %p590 = scmp.lt.s32.totalorder %s30, 1
      %s591 = scalar_select %p590, %s30, 1
      %s592 = smul.addr %s591, 4
      %s593 = smul.addr %s592, 4
      %s594 = scalar_lea.vmem %s6, %s593
      %p595 = pneg %p214
      %p596 = pneg %p211
      %p597 = scmp.lt.s32.totalorder %s30, 1
      %s598 = scalar_select %p597, %s30, 1
      %s599 = scalar_lea.vmem %s7, %s598
      %p600 = pneg %p240
      %p601 = pneg %p237
      %p602 = scmp.lt.s32.totalorder %s30, 1
      %s603 = scalar_select %p602, %s30, 1
      %s604 = smul.addr %s603, 2
      %s605 = scalar_lea.vmem %s8, %s604
      %p606 = pneg %p266
      %p607 = pneg %p263
      %p608 = scmp.lt.s32.totalorder %s30, 1
      %s609 = scalar_select %p608, %s30, 1
      %s610 = smul.addr %s609, 4
      %s611 = smul.addr %s610, 4
      %s612 = scalar_lea.vmem %s9, %s611
      %p613 = pneg %p292
      %p614 = pneg %p289
      %p615 = scmp.lt.s32.totalorder %s30, 1
      %s616 = scalar_select %p615, %s30, 1
      %s617 = scalar_lea.vmem %s10, %s616
      %p618 = pneg %p318
      %p619 = pneg %p315
      %p620 = scmp.lt.s32.totalorder %s30, 1
      %s621 = scalar_select %p620, %s30, 1
      %s622 = smul.addr %s621, 8
      %s623 = smul.addr %s622, 4
      %s624 = scalar_lea.vmem %s11, %s623
      %p625 = pneg %p344
      %p626 = pneg %p341
      %p627 = scmp.lt.s32.totalorder %s30, 1
      %s628 = scalar_select %p627, %s30, 1
      %s629 = scalar_lea.vmem %s12, %s628
      %p630 = pneg %p370
      %p631 = pneg %p367
      %p632 = scmp.lt.s32.totalorder %s30, 1
      %s633 = scalar_select %p632, %s30, 1
      %s634 = smul.addr %s633, 2
      %s635 = scalar_lea.vmem %s13, %s634
      %p636 = pneg %p396
      %p637 = pneg %p393
      %p638 = pneg %p422
      %p639 = pneg %p419
      %s640 = smul.u32 2, %s29
      %p641 = scmp.lt.s32.totalorder %s640, 1
      %s642 = scalar_select %p641, %s640, 1
      %s643 = smul.addr %s642, 8
      %s644 = scalar_lea.vmem %s14, %s643
      %p645 = scmp.lt.s32.totalorder %s29, 0
      %s646 = scalar_select %p645, %s29, 0
      %s647 = smul.addr %s646, 2
      %s648 = scalar_lea.vmem %s0, %s647
      %s649 = smul.u32 2, %s29
      %p650 = scmp.lt.s32.totalorder %s649, 1
      %s651 = scalar_select %p650, %s649, 1
      %s652 = smul.addr %s651, 8
      %s653 = scalar_lea.vmem %s1, %s652
      %s654 = smul.u32 2, %s29
      %s655 = smul.u32 2, %s29
      %p656 = scmp.lt.s32.totalorder %s655, 1
      %s657 = scalar_select %p656, %s655, 1
      %s658 = smul.addr %s657, 8
      %s659 = scalar_lea.vmem %s2, %s658
      %s660 = smul.u32 2, %s29
      %p661 = scmp.lt.s32.totalorder %s29, 0
      %s662 = scalar_select %p661, %s29, 0
      %s663 = smul.addr %s662, 2
      %s664 = scalar_lea.vmem %s3, %s663
      %p665 = scmp.lt.s32.totalorder %s30, 1
      %s666 = scalar_select %p665, %s30, 1
      %s667 = smul.addr %s666, 12
      %s668 = smul.addr %s667, 4
      %s669 = scalar_lea.vmem %s4, %s668
      %p670 = scmp.lt.s32.totalorder %s30, 1
      %s671 = scalar_select %p670, %s30, 1
      %s672 = smul.addr %s671, 4
      %s673 = scalar_lea.vmem %s5, %s672
      %p674 = scmp.lt.s32.totalorder %s30, 1
      %s675 = scalar_select %p674, %s30, 1
      %s676 = smul.addr %s675, 4
      %s677 = smul.addr %s676, 4
      %s678 = scalar_lea.vmem %s6, %s677
      %p679 = scmp.lt.s32.totalorder %s30, 1
      %s680 = scalar_select %p679, %s30, 1
      %s681 = scalar_lea.vmem %s7, %s680
      %p682 = scmp.lt.s32.totalorder %s30, 1
      %s683 = scalar_select %p682, %s30, 1
      %s684 = smul.addr %s683, 2
      %s685 = scalar_lea.vmem %s8, %s684
      %p686 = scmp.lt.s32.totalorder %s30, 1
      %s687 = scalar_select %p686, %s30, 1
      %s688 = smul.addr %s687, 4
      %s689 = smul.addr %s688, 4
      %s690 = scalar_lea.vmem %s9, %s689
      %p691 = scmp.lt.s32.totalorder %s30, 1
      %s692 = scalar_select %p691, %s30, 1
      %s693 = scalar_lea.vmem %s10, %s692
      %p694 = scmp.lt.s32.totalorder %s30, 1
      %s695 = scalar_select %p694, %s30, 1
      %s696 = smul.addr %s695, 8
      %s697 = smul.addr %s696, 4
      %s698 = scalar_lea.vmem %s11, %s697
      %p699 = scmp.lt.s32.totalorder %s30, 1
      %s700 = scalar_select %p699, %s30, 1
      %s701 = scalar_lea.vmem %s12, %s700
      %p702 = scmp.lt.s32.totalorder %s30, 1
      %s703 = scalar_select %p702, %s30, 1
      %s704 = smul.addr %s703, 2
      %s705 = scalar_lea.vmem %s13, %s704
      %s706 = smul.u32 2, %s29
      %p707 = scmp.lt.s32.totalorder %s706, 1
      %s708 = scalar_select %p707, %s706, 1
      %s709 = smul.addr %s708, 8
      %s710 = scalar_lea.vmem %s14, %s709
      %s711 = smul.u32 2, %s29
      %p713 = scmp.eq.s32.totalorder %s30, 0
      // Predicated region
      $region77: #{time_model_forward.3} parent=75 // pred_check
        %p714 = pneg %p713
      $region78: #{time_model_forward.3} parent=75 // pred_check_branch
        %716 = sbr.rel (%p714) target = $region80
      $region79: #{time_model_forward.3} parent=75 // pred_region
        %v717 = vld [vmem:[%s653] sm:$0xff]
        %v718 = vld [vmem:[%s653 + $0x8] sm:$0xff]
        %vm719 = vcmask 261120
        %720 = vst.msk [vmem:[#allocation2] sm:$0xff] %vm719, %v717
        %721 = vst.msk [vmem:[#allocation2 + $0x8] sm:$0xff] %vm719, %v718
        %v722 = vld [vmem:[%s648] sm:$0x3]
        %v723 = vlaneseq
        %v724 = vshrl.u32 %v723, 7
        %v725 = vlaneseq
        %v726 = vand.u32 %v725, 127
        %vm727 = vcmp.le.s32.totalorder %v726, %v724
        %vm728 = vcmp.ne.s32.totalorder %v722, 0
        %v729 = vsel %vm728, 1, 0
        %v731 = vunpack.c.l.s4 1966171168
        %v732 = vunpack.c.0.s8 %v731
        %v733 = vlaneseq
        %v734 = vshrl.u32 %v733, 7
        %v735 = vsub.s32 %v732, %v734
        %v736 = vrot.slane %v729, %v735
        %v737 = vcombine.high %v736, %v736
        %v739 = vunpack.c.l.s4 1966171168
        %v740 = vunpack.c.0.s8 %v739
        %v741 = vlaneseq
        %v742 = vshrl.u32 %v741, 7
        %v743 = vsub.s32 %v740, %v742
        %v744 = vrot.slane %v736, %v743
        %v746 = vunpack.c.l.s4 1966171168
        %v747 = vunpack.c.0.s8 %v746
        %v748 = vlaneseq
        %v749 = vshrl.u32 %v748, 7
        %v750 = vsub.s32 %v747, %v749
        %v751 = vrot.slane %v737, %v750
        %vm752 = vcmp.ne.s32.totalorder %v744, 0
        %vm753 = vcmp.ne.s32.totalorder %v751, 0
        %v754 = vsel %vm727, 1, 0
        %vm755 = vcmp.eq.s32.totalorder %v754, 1
        %v756 = vsel %vm752, 1, 0
        %v757 = vsel %vm753, 1, 0
        %v758 = vlaneseq
        %v759 = vshrl.u32 %v758, 7
        %v760 = vsub.s32 0, %v759
        %v761 = vrot.slane %v756, %v760
        %v762 = vlaneseq
        %v763 = vshrl.u32 %v762, 7
        %v764 = vsub.s32 0, %v763
        %v765 = vrot.slane %v757, %v764
        %vm766 = vcmp.eq.s32.totalorder %v761, 1
        %vm767 = vcmp.eq.s32.totalorder %v765, 1
        %vm768 = vmand %vm755, %vm766
        %vm769 = vmand %vm755, %vm767
        %v770 = vsel %vm768, 0.0, -10000.0
        %v771 = vsel %vm769, 0.0, -10000.0
        %v772 = vld [vmem:[%s664] sm:$0x3]
        %v775 = vunpack.c.l.s4 1966171168
        %v776 = vunpack.c.0.s8 %v775
        %v777 = vlaneseq
        %v778 = vshrl.u32 %v777, 7
        %v779 = vsub.s32 %v776, %v778
        %v780 = vrot.slane %v772, %v779
        %v781 = vcombine.high %v780, %v780
        %v783 = vunpack.c.l.s4 1966171168
        %v784 = vunpack.c.0.s8 %v783
        %v785 = vlaneseq
        %v786 = vshrl.u32 %v785, 7
        %v787 = vsub.s32 %v784, %v786
        %v788 = vrot.slane %v780, %v787
        %v790 = vunpack.c.l.s4 1966171168
        %v791 = vunpack.c.0.s8 %v790
        %v792 = vlaneseq
        %v793 = vshrl.u32 %v792, 7
        %v794 = vsub.s32 %v791, %v793
        %v795 = vrot.slane %v781, %v794
        %v796 = vlaneseq
        %v797 = vshrl.u32 %v796, 7
        %v798 = vsub.s32 0, %v797
        %v799 = vrot.slane %v788, %v798
        %v800 = vlaneseq
        %v801 = vshrl.u32 %v800, 7
        %v802 = vsub.s32 0, %v801
        %v803 = vrot.slane %v795, %v802
        %v806 = vadd.f32 %v770, %v799
        %v807 = vadd.f32 %v771, %v803
        %vm808 = vcmask 64512
        %809 = vst.msk [vmem:[#allocation3] sm:$0xff] %vm808, %v806
        %810 = vst.msk [vmem:[#allocation3 + $0x8] sm:$0xff] %vm808, %v807
      $region80: #{time_model_forward.3} parent=75 // pred_fallthru
        _
      %v811 = vld [vmem:[#allocation2] sm:$0xff]
      %v812 = vld [vmem:[#allocation2 + $0x8] sm:$0xff]
      %v813 = vpack.c.bf16 %v812, %v811
      %v814 = vld [vmem:[%s659] sm:$0xff]
      %v815 = vld [vmem:[%s659 + $0x8] sm:$0xff]
      %s816 = scalar_select %p713, 1, 0
      %v817 = vstv %s816
      %vm818 = vcmp.eq.s32.totalorder %v817, 1
      %v819 = vsel %vm818, %v814, %v811
      %v820 = vsel %vm818, %v815, %v812
      %v821 = vld [vmem:[%s669] sm:$0xf]
      %v822 = vld [vmem:[%s669 + $0x4] sm:$0xf]
      %v823 = vld [vmem:[%s669 + $0x8] sm:$0xf]
      %v824 = vld [vmem:[%s669 + $0xc] sm:$0xf]
      %v825 = vld [vmem:[%s669 + $0x10] sm:$0xf]
      %v826 = vld [vmem:[%s669 + $0x14] sm:$0xf]
      %v827 = vld [vmem:[%s669 + $0x18] sm:$0xf]
      %v828 = vld [vmem:[%s669 + $0x1c] sm:$0xf]
      %v829 = vld [vmem:[%s669 + $0x20] sm:$0xf]
      %v830 = vld [vmem:[%s669 + $0x24] sm:$0xf]
      %v831 = vld [vmem:[%s669 + $0x28] sm:$0xf]
      %v832 = vld [vmem:[%s669 + $0x2c] sm:$0xf]
      %v833 = vld [vmem:[%s673] sm:$0x7]
      %v834 = vlaneseq
      %v835 = vshrl.u32 %v834, 7
      %v836 = vsub.s32 0, %v835
      %v837 = vrot.slane %v833, %v836
      %v842 = vunpack.c.l.b16 %v821
      %v843 = vunpack.c.l.b16 %v822
      %v844 = vunpack.c.l.b16 %v823
      %v845 = vunpack.c.l.b16 %v824
      %v846 = vpack.c.b16 %v843, %v842
      %v847 = vpack.c.b16 %v845, %v844
      %vm850 = vcmask 261120
      %v852 = vsel %vm850, %v813, 0
      %854 = vmatprep.subr.bf16.mxu0 0
      %855 = vmatpush1.bf16.msra.mxu0 %v846
      %856 = vmatprep.subr.bf16.mxu0 0
      %857 = vmatpush1.bf16.msra.mxu0 %v847
      %858 = vmatprep.subr.bf16.mxu0 0
      %859 = vmatpush1.bf16.msra.mxu0 0
      %860 = vmatprep.subr.bf16.mxu0 0
      %861 = vmatpush1.bf16.msra.mxu0 0
      %862 = vmatprep.subr.bf16.mxu0 0
      %863 = vmatpush1.bf16.msra.mxu0 0
      %864 = vmatprep.subr.bf16.mxu0 0
      %865 = vmatpush1.bf16.msra.mxu0 0
      %866 = vmatprep.subr.bf16.mxu0 0
      %867 = vmatpush1.bf16.msra.mxu0 0
      %868 = vmatprep.subr.bf16.mxu0 0
      %869 = vmatpush1.bf16.msra.mxu0 0
      %870 = vmatprep.subr.bf16.mxu0 0
      %871 = vmatpush1.bf16.msra.mxu0 0
      %872 = vmatprep.subr.bf16.mxu0 0
      %873 = vmatpush1.bf16.msra.mxu0 0
      %874 = vmatprep.subr.bf16.mxu0 0
      %875 = vmatpush1.bf16.msra.mxu0 0
      %876 = vmatprep.subr.bf16.mxu0 0
      %877 = vmatpush1.bf16.msra.mxu0 0
      %878 = vmatprep.subr.bf16.mxu0 0
      %879 = vmatpush1.bf16.msra.mxu0 0
      %880 = vmatprep.subr.bf16.mxu0 0
      %881 = vmatpush1.bf16.msra.mxu0 0
      %882 = vmatprep.subr.bf16.mxu0 0
      %883 = vmatpush1.bf16.msra.mxu0 0
      %884 = vmatprep.subr.bf16.mxu0 0
      %885 = vmatpush1.bf16.msra.mxu0 0
      %886 = vmatprep.mubr.bf16.mxu0 0
      %887 = vmatmul.mubr.bf16.gmra.mrb[0].mxu0 %v852
      %v888 = vpop.f32.mrb[0].mxu0
      %v889 = vadd.f32 %v837, %v888
      %v890 = vpop.f32.mrb[0].mxu0
      %v891 = vpop.f32.mrb[0].mxu0
      %v892 = vadd.f32 %v837, %v891
      %v893 = vpop.f32.mrb[0].mxu0
      %894 = vdwg.mxu0
      %v895 = vlaneseq
      %v896 = vshrl.u32 %v895, 7
      %v897 = vsub.s32 1, %v896
      %v898 = vrot.slane %v833, %v897
      %v903 = vunpack.c.l.b16 %v825
      %v904 = vunpack.c.l.b16 %v826
      %v905 = vunpack.c.l.b16 %v827
      %v906 = vunpack.c.l.b16 %v828
      %v907 = vpack.c.b16 %v904, %v903
      %v908 = vpack.c.b16 %v906, %v905
      %911 = vmatprep.subr.bf16.mxu0 0
      %912 = vmatpush1.bf16.msra.mxu0 %v907
      %913 = vmatprep.subr.bf16.mxu0 0
      %914 = vmatpush1.bf16.msra.mxu0 %v908
      %915 = vmatprep.subr.bf16.mxu0 0
      %916 = vmatpush1.bf16.msra.mxu0 0
      %917 = vmatprep.subr.bf16.mxu0 0
      %918 = vmatpush1.bf16.msra.mxu0 0
      %919 = vmatprep.subr.bf16.mxu0 0
      %920 = vmatpush1.bf16.msra.mxu0 0
      %921 = vmatprep.subr.bf16.mxu0 0
      %922 = vmatpush1.bf16.msra.mxu0 0
      %923 = vmatprep.subr.bf16.mxu0 0
      %924 = vmatpush1.bf16.msra.mxu0 0
      %925 = vmatprep.subr.bf16.mxu0 0
      %926 = vmatpush1.bf16.msra.mxu0 0
      %927 = vmatprep.subr.bf16.mxu0 0
      %928 = vmatpush1.bf16.msra.mxu0 0
      %929 = vmatprep.subr.bf16.mxu0 0
      %930 = vmatpush1.bf16.msra.mxu0 0
      %931 = vmatprep.subr.bf16.mxu0 0
      %932 = vmatpush1.bf16.msra.mxu0 0
      %933 = vmatprep.subr.bf16.mxu0 0
      %934 = vmatpush1.bf16.msra.mxu0 0
      %935 = vmatprep.subr.bf16.mxu0 0
      %936 = vmatpush1.bf16.msra.mxu0 0
      %937 = vmatprep.subr.bf16.mxu0 0
      %938 = vmatpush1.bf16.msra.mxu0 0
      %939 = vmatprep.subr.bf16.mxu0 0
      %940 = vmatpush1.bf16.msra.mxu0 0
      %941 = vmatprep.subr.bf16.mxu0 0
      %942 = vmatpush1.bf16.msra.mxu0 0
      %943 = vmatprep.mubr.bf16.mxu0 0
      %944 = vmatmul.mubr.bf16.gmra.mrb[0].mxu0 %v852
      %v945 = vpop.f32.mrb[0].mxu0
      %v946 = vadd.f32 %v898, %v945
      %v947 = vpop.f32.mrb[0].mxu0
      %v948 = vpop.f32.mrb[0].mxu0
      %v949 = vadd.f32 %v898, %v948
      %v950 = vpop.f32.mrb[0].mxu0
      %951 = vdwg.mxu0
      %v952 = vpack.c.bf16 %v820, %v819
      %v953 = vlaneseq
      %v954 = vshrl.u32 %v953, 7
      %v955 = vsub.s32 2, %v954
      %v956 = vrot.slane %v833, %v955
      %v961 = vunpack.c.l.b16 %v829
      %v962 = vunpack.c.l.b16 %v830
      %v963 = vunpack.c.l.b16 %v831
      %v964 = vunpack.c.l.b16 %v832
      %v965 = vpack.c.b16 %v962, %v961
      %v966 = vpack.c.b16 %v964, %v963
      %v970 = vsel %vm850, %v952, 0
      %972 = vmatprep.subr.bf16.mxu0 0
      %973 = vmatpush1.bf16.msra.mxu0 %v965
      %974 = vmatprep.subr.bf16.mxu0 0
      %975 = vmatpush1.bf16.msra.mxu0 %v966
      %976 = vmatprep.subr.bf16.mxu0 0
      %977 = vmatpush1.bf16.msra.mxu0 0
      %978 = vmatprep.subr.bf16.mxu0 0
      %979 = vmatpush1.bf16.msra.mxu0 0
      %980 = vmatprep.subr.bf16.mxu0 0
      %981 = vmatpush1.bf16.msra.mxu0 0
      %982 = vmatprep.subr.bf16.mxu0 0
      %983 = vmatpush1.bf16.msra.mxu0 0
      %984 = vmatprep.subr.bf16.mxu0 0
      %985 = vmatpush1.bf16.msra.mxu0 0
      %986 = vmatprep.subr.bf16.mxu0 0
      %987 = vmatpush1.bf16.msra.mxu0 0
      %988 = vmatprep.subr.bf16.mxu0 0
      %989 = vmatpush1.bf16.msra.mxu0 0
      %990 = vmatprep.subr.bf16.mxu0 0
      %991 = vmatpush1.bf16.msra.mxu0 0
      %992 = vmatprep.subr.bf16.mxu0 0
      %993 = vmatpush1.bf16.msra.mxu0 0
      %994 = vmatprep.subr.bf16.mxu0 0
      %995 = vmatpush1.bf16.msra.mxu0 0
      %996 = vmatprep.subr.bf16.mxu0 0
      %997 = vmatpush1.bf16.msra.mxu0 0
      %998 = vmatprep.subr.bf16.mxu0 0
      %999 = vmatpush1.bf16.msra.mxu0 0
      %1000 = vmatprep.subr.bf16.mxu0 0
      %1001 = vmatpush1.bf16.msra.mxu0 0
      %1002 = vmatprep.subr.bf16.mxu0 0
      %1003 = vmatpush1.bf16.msra.mxu0 0
      %1004 = vmatprep.mubr.bf16.mxu0 0
      %1005 = vmatmul.mubr.bf16.gmra.mrb[0].mxu0 %v970
      %v1006 = vpop.f32.mrb[0].mxu0
      %v1007 = vadd.f32 %v956, %v1006
      %v1008 = vpop.f32.mrb[0].mxu0
      %v1009 = vpop.f32.mrb[0].mxu0
      %v1010 = vadd.f32 %v956, %v1009
      %v1011 = vpop.f32.mrb[0].mxu0
      %1012 = vdwg.mxu0
      %v1013 = vpack.c.bf16 %v889, %v889
      %v1014 = vpack.c.bf16 %v892, %v892
      %v1015 = vpack.c.bf16 %v946, %v946
      %v1016 = vpack.c.bf16 %v949, %v949
      %v1017 = vpack.c.bf16 %v1007, %v1007
      %v1018 = vpack.c.bf16 %v1010, %v1010
      %v1019 = vld [vmem:[#allocation3] sm:$0xff]
      %v1020 = vld [vmem:[#allocation3 + $0x8] sm:$0xff]
      %vm1021 = vcmask 130048
      %v1023 = vsel %vm1021, %v1013, 0
      %v1026 = vsel %vm1021, %v1015, 0
      %1028 = vmatprep.subr.bf16.mxu0 0
      %1029 = vmatpush1.bf16.xpose.msra.mxu0 %v1026
      %1030 = vmatprep.subr.bf16.mxu0 0
      %1031 = vmatpush1.bf16.xpose.msra.mxu0 0
      %1032 = vmatprep.subr.bf16.mxu0 0
      %1033 = vmatpush1.bf16.xpose.msra.mxu0 0
      %1034 = vmatprep.subr.bf16.mxu0 0
      %1035 = vmatpush1.bf16.xpose.msra.mxu0 0
      %1036 = vmatprep.subr.bf16.mxu0 0
      %1037 = vmatpush1.bf16.xpose.msra.mxu0 0
      %1038 = vmatprep.subr.bf16.mxu0 0
      %1039 = vmatpush1.bf16.xpose.msra.mxu0 0
      %1040 = vmatprep.subr.bf16.mxu0 0
      %1041 = vmatpush1.bf16.xpose.msra.mxu0 0
      %1042 = vmatprep.subr.bf16.mxu0 0
      %1043 = vmatpush1.bf16.xpose.msra.mxu0 0
      %1044 = vmatprep.subr.bf16.mxu0 0
      %1045 = vmatpush1.bf16.xpose.msra.mxu0 0
      %1046 = vmatprep.subr.bf16.mxu0 0
      %1047 = vmatpush1.bf16.xpose.msra.mxu0 0
      %1048 = vmatprep.subr.bf16.mxu0 0
      %1049 = vmatpush1.bf16.xpose.msra.mxu0 0
      %1050 = vmatprep.subr.bf16.mxu0 0
      %1051 = vmatpush1.bf16.xpose.msra.mxu0 0
      %1052 = vmatprep.subr.bf16.mxu0 0
      %1053 = vmatpush1.bf16.xpose.msra.mxu0 0
      %1054 = vmatprep.subr.bf16.mxu0 0
      %1055 = vmatpush1.bf16.xpose.msra.mxu0 0
      %1056 = vmatprep.subr.bf16.mxu0 0
      %1057 = vmatpush1.bf16.xpose.msra.mxu0 0
      %1058 = vmatprep.subr.bf16.mxu0 0
      %1059 = vmatpush1.bf16.xpose.msra.mxu0 0
      %1060 = vmatprep.mubr.bf16.mxu0 0
      %1061 = vmatmul.mubr.bf16.gmra.mrb[0].mxu0 %v1023
      %v1062 = vpop.f32.mrb[0].mxu0
      %v1063 = vadd.f32 %v1019, %v1062
      %v1064 = vpop.f32.mrb[0].mxu0
      %v1065 = vpop.f32.mrb[0].mxu0
      %v1066 = vpop.f32.mrb[0].mxu0
      %1067 = vdwg.mxu0
      %v1069 = vsel %vm1021, %v1014, 0
      %v1072 = vsel %vm1021, %v1016, 0
      %1074 = vmatprep.subr.bf16.mxu0 0
      %1075 = vmatpush1.bf16.xpose.msra.mxu0 %v1072
      %1076 = vmatprep.subr.bf16.mxu0 0
      %1077 = vmatpush1.bf16.xpose.msra.mxu0 0
      %1078 = vmatprep.subr.bf16.mxu0 0
      %1079 = vmatpush1.bf16.xpose.msra.mxu0 0
      %1080 = vmatprep.subr.bf16.mxu0 0
      %1081 = vmatpush1.bf16.xpose.msra.mxu0 0
      %1082 = vmatprep.subr.bf16.mxu0 0
      %1083 = vmatpush1.bf16.xpose.msra.mxu0 0
      %1084 = vmatprep.subr.bf16.mxu0 0
      %1085 = vmatpush1.bf16.xpose.msra.mxu0 0
      %1086 = vmatprep.subr.bf16.mxu0 0
      %1087 = vmatpush1.bf16.xpose.msra.mxu0 0
      %1088 = vmatprep.subr.bf16.mxu0 0
      %1089 = vmatpush1.bf16.xpose.msra.mxu0 0
      %1090 = vmatprep.subr.bf16.mxu0 0
      %1091 = vmatpush1.bf16.xpose.msra.mxu0 0
      %1092 = vmatprep.subr.bf16.mxu0 0
      %1093 = vmatpush1.bf16.xpose.msra.mxu0 0
      %1094 = vmatprep.subr.bf16.mxu0 0
      %1095 = vmatpush1.bf16.xpose.msra.mxu0 0
      %1096 = vmatprep.subr.bf16.mxu0 0
      %1097 = vmatpush1.bf16.xpose.msra.mxu0 0
      %1098 = vmatprep.subr.bf16.mxu0 0
      %1099 = vmatpush1.bf16.xpose.msra.mxu0 0
      %1100 = vmatprep.subr.bf16.mxu0 0
      %1101 = vmatpush1.bf16.xpose.msra.mxu0 0
      %1102 = vmatprep.subr.bf16.mxu0 0
      %1103 = vmatpush1.bf16.xpose.msra.mxu0 0
      %1104 = vmatprep.subr.bf16.mxu0 0
      %1105 = vmatpush1.bf16.xpose.msra.mxu0 0
      %1106 = vmatprep.mubr.bf16.mxu0 0
      %1107 = vmatmul.mubr.bf16.gmra.mrb[0].mxu0 %v1069
      %v1108 = vpop.f32.mrb[0].mxu0
      %v1109 = vadd.f32 %v1020, %v1108
      %v1110 = vpop.f32.mrb[0].mxu0
      %v1111 = vpop.f32.mrb[0].mxu0
      %v1112 = vpop.f32.mrb[0].mxu0
      %1113 = vdwg.mxu0
      %vm1114 = vcmask 64512
      %v1115 = vsel %vm1114, %v1063, -inf
      %1116 = vmax.xlane.f32.xlu0 %v1115
      %v1117 = vpop.xlane.xlu0 %1116
      %v1118 = vsel %vm1114, %v1109, -inf
      %1119 = vmax.xlane.f32.xlu0 %v1118
      %v1120 = vpop.xlane.xlu0 %1119
      %v1121 = vsub.f32 %v1063, %v1117
      %v1122 = vsub.f32 %v1109, %v1120
      %v1123 = vmul.f32 %v1121, 1.442695
      %v1124 = vpow.pop %v1123
      %v1125 = vmul.f32 %v1122, 1.442695
      %v1126 = vpow.pop %v1125
      %v1127 = vsel %vm1114, %v1124, 0.0
      %1128 = vadd.xlane.f32.xlu0 %v1127
      %v1129 = vpop.xlane.xlu0 %1128
      %v1130 = vsel %vm1114, %v1126, 0.0
      %1131 = vadd.xlane.f32.xlu0 %v1130
      %v1132 = vpop.xlane.xlu0 %1131
      %v1133 = vrcp.pop %v1129
      %v1134 = vrcp.pop %v1132
      %v1135 = vmul.f32 %v1124, %v1133
      %v1136 = vmul.f32 %v1126, %v1134
      %v1137 = vpack.c.bf16 %v1135, %v1135
      %v1138 = vpack.c.bf16 %v1136, %v1136
      %v1140 = vsel %vm1114, %v1137, 0
      %vm1142 = vcmask 1043456
      %v1144 = vsel %vm1142, %v1017, 0
      %1146 = vmatprep.subr.bf16.mxu0 0
      %1147 = vmatpush1.bf16.msra.mxu0 %v1144
      %1148 = vmatprep.subr.bf16.mxu0 0
      %1149 = vmatpush1.bf16.msra.mxu0 0
      %1150 = vmatprep.subr.bf16.mxu0 0
      %1151 = vmatpush1.bf16.msra.mxu0 0
      %1152 = vmatprep.subr.bf16.mxu0 0
      %1153 = vmatpush1.bf16.msra.mxu0 0
      %1154 = vmatprep.subr.bf16.mxu0 0
      %1155 = vmatpush1.bf16.msra.mxu0 0
      %1156 = vmatprep.subr.bf16.mxu0 0
      %1157 = vmatpush1.bf16.msra.mxu0 0
      %1158 = vmatprep.subr.bf16.mxu0 0
      %1159 = vmatpush1.bf16.msra.mxu0 0
      %1160 = vmatprep.subr.bf16.mxu0 0
      %1161 = vmatpush1.bf16.msra.mxu0 0
      %1162 = vmatprep.subr.bf16.mxu0 0
      %1163 = vmatpush1.bf16.msra.mxu0 0
      %1164 = vmatprep.subr.bf16.mxu0 0
      %1165 = vmatpush1.bf16.msra.mxu0 0
      %1166 = vmatprep.subr.bf16.mxu0 0
      %1167 = vmatpush1.bf16.msra.mxu0 0
      %1168 = vmatprep.subr.bf16.mxu0 0
      %1169 = vmatpush1.bf16.msra.mxu0 0
      %1170 = vmatprep.subr.bf16.mxu0 0
      %1171 = vmatpush1.bf16.msra.mxu0 0
      %1172 = vmatprep.subr.bf16.mxu0 0
      %1173 = vmatpush1.bf16.msra.mxu0 0
      %1174 = vmatprep.subr.bf16.mxu0 0
      %1175 = vmatpush1.bf16.msra.mxu0 0
      %1176 = vmatprep.subr.bf16.mxu0 0
      %1177 = vmatpush1.bf16.msra.mxu0 0
      %1178 = vmatprep.mubr.bf16.mxu0 0
      %1179 = vmatmul.mubr.bf16.gmra.mrb[0].mxu0 %v1140
      %v1180 = vpop.f32.mrb[0].mxu0
      %v1181 = vadd.f32 0.0, %v1180
      %v1182 = vpop.f32.mrb[0].mxu0
      %v1183 = vpop.f32.mrb[0].mxu0
      %v1184 = vpop.f32.mrb[0].mxu0
      %1185 = vdwg.mxu0
      %v1187 = vsel %vm1114, %v1138, 0
      %v1190 = vsel %vm1142, %v1018, 0
      %1192 = vmatprep.subr.bf16.mxu0 0
      %1193 = vmatpush1.bf16.msra.mxu0 %v1190
      %1194 = vmatprep.subr.bf16.mxu0 0
      %1195 = vmatpush1.bf16.msra.mxu0 0
      %1196 = vmatprep.subr.bf16.mxu0 0
      %1197 = vmatpush1.bf16.msra.mxu0 0
      %1198 = vmatprep.subr.bf16.mxu0 0
      %1199 = vmatpush1.bf16.msra.mxu0 0
      %1200 = vmatprep.subr.bf16.mxu0 0
      %1201 = vmatpush1.bf16.msra.mxu0 0
      %1202 = vmatprep.subr.bf16.mxu0 0
      %1203 = vmatpush1.bf16.msra.mxu0 0
      %1204 = vmatprep.subr.bf16.mxu0 0
      %1205 = vmatpush1.bf16.msra.mxu0 0
      %1206 = vmatprep.subr.bf16.mxu0 0
      %1207 = vmatpush1.bf16.msra.mxu0 0
      %1208 = vmatprep.subr.bf16.mxu0 0
      %1209 = vmatpush1.bf16.msra.mxu0 0
      %1210 = vmatprep.subr.bf16.mxu0 0
      %1211 = vmatpush1.bf16.msra.mxu0 0
      %1212 = vmatprep.subr.bf16.mxu0 0
      %1213 = vmatpush1.bf16.msra.mxu0 0
      %1214 = vmatprep.subr.bf16.mxu0 0
      %1215 = vmatpush1.bf16.msra.mxu0 0
      %1216 = vmatprep.subr.bf16.mxu0 0
      %1217 = vmatpush1.bf16.msra.mxu0 0
      %1218 = vmatprep.subr.bf16.mxu0 0
      %1219 = vmatpush1.bf16.msra.mxu0 0
      %1220 = vmatprep.subr.bf16.mxu0 0
      %1221 = vmatpush1.bf16.msra.mxu0 0
      %1222 = vmatprep.subr.bf16.mxu0 0
      %1223 = vmatpush1.bf16.msra.mxu0 0
      %1224 = vmatprep.mubr.bf16.mxu0 0
      %1225 = vmatmul.mubr.bf16.gmra.mrb[0].mxu0 %v1187
      %v1226 = vpop.f32.mrb[0].mxu0
      %v1227 = vadd.f32 0.0, %v1226
      %v1228 = vpop.f32.mrb[0].mxu0
      %v1229 = vpop.f32.mrb[0].mxu0
      %v1230 = vpop.f32.mrb[0].mxu0
      %1231 = vdwg.mxu0
      %1233 = vrot.lane.b32.xlu0 %v1013, 112
      %v1234 = vpop.permute.xlu0 %1233
      %1236 = vrot.lane.b32.xlu0 %v1015, 112
      %v1237 = vpop.permute.xlu0 %1236
      %v1239 = vsel %vm1021, %v1234, 0
      %v1242 = vsel %vm1021, %v1237, 0
      %1244 = vmatprep.subr.bf16.mxu0 0
      %1245 = vmatpush1.bf16.xpose.msra.mxu0 %v1242
      %1246 = vmatprep.subr.bf16.mxu0 0
      %1247 = vmatpush1.bf16.xpose.msra.mxu0 0
      %1248 = vmatprep.subr.bf16.mxu0 0
      %1249 = vmatpush1.bf16.xpose.msra.mxu0 0
      %1250 = vmatprep.subr.bf16.mxu0 0
      %1251 = vmatpush1.bf16.xpose.msra.mxu0 0
      %1252 = vmatprep.subr.bf16.mxu0 0
      %1253 = vmatpush1.bf16.xpose.msra.mxu0 0
      %1254 = vmatprep.subr.bf16.mxu0 0
      %1255 = vmatpush1.bf16.xpose.msra.mxu0 0
      %1256 = vmatprep.subr.bf16.mxu0 0
      %1257 = vmatpush1.bf16.xpose.msra.mxu0 0
      %1258 = vmatprep.subr.bf16.mxu0 0
      %1259 = vmatpush1.bf16.xpose.msra.mxu0 0
      %1260 = vmatprep.subr.bf16.mxu0 0
      %1261 = vmatpush1.bf16.xpose.msra.mxu0 0
      %1262 = vmatprep.subr.bf16.mxu0 0
      %1263 = vmatpush1.bf16.xpose.msra.mxu0 0
      %1264 = vmatprep.subr.bf16.mxu0 0
      %1265 = vmatpush1.bf16.xpose.msra.mxu0 0
      %1266 = vmatprep.subr.bf16.mxu0 0
      %1267 = vmatpush1.bf16.xpose.msra.mxu0 0
      %1268 = vmatprep.subr.bf16.mxu0 0
      %1269 = vmatpush1.bf16.xpose.msra.mxu0 0
      %1270 = vmatprep.subr.bf16.mxu0 0
      %1271 = vmatpush1.bf16.xpose.msra.mxu0 0
      %1272 = vmatprep.subr.bf16.mxu0 0
      %1273 = vmatpush1.bf16.xpose.msra.mxu0 0
      %1274 = vmatprep.subr.bf16.mxu0 0
      %1275 = vmatpush1.bf16.xpose.msra.mxu0 0
      %1276 = vmatprep.mubr.bf16.mxu0 0
      %1277 = vmatmul.mubr.bf16.gmra.mrb[0].mxu0 %v1239
      %v1278 = vpop.f32.mrb[0].mxu0
      %v1279 = vadd.f32 %v1019, %v1278
      %v1280 = vpop.f32.mrb[0].mxu0
      %v1281 = vpop.f32.mrb[0].mxu0
      %v1282 = vpop.f32.mrb[0].mxu0
      %1283 = vdwg.mxu0
      %1285 = vrot.lane.b32.xlu0 %v1014, 112
      %v1286 = vpop.permute.xlu0 %1285
      %1288 = vrot.lane.b32.xlu0 %v1016, 112
      %v1289 = vpop.permute.xlu0 %1288
      %v1291 = vsel %vm1021, %v1286, 0
      %v1294 = vsel %vm1021, %v1289, 0
      %1296 = vmatprep.subr.bf16.mxu0 0
      %1297 = vmatpush1.bf16.xpose.msra.mxu0 %v1294
      %1298 = vmatprep.subr.bf16.mxu0 0
      %1299 = vmatpush1.bf16.xpose.msra.mxu0 0
      %1300 = vmatprep.subr.bf16.mxu0 0
      %1301 = vmatpush1.bf16.xpose.msra.mxu0 0
      %1302 = vmatprep.subr.bf16.mxu0 0
      %1303 = vmatpush1.bf16.xpose.msra.mxu0 0
      %1304 = vmatprep.subr.bf16.mxu0 0
      %1305 = vmatpush1.bf16.xpose.msra.mxu0 0
      %1306 = vmatprep.subr.bf16.mxu0 0
      %1307 = vmatpush1.bf16.xpose.msra.mxu0 0
      %1308 = vmatprep.subr.bf16.mxu0 0
      %1309 = vmatpush1.bf16.xpose.msra.mxu0 0
      %1310 = vmatprep.subr.bf16.mxu0 0
      %1311 = vmatpush1.bf16.xpose.msra.mxu0 0
      %1312 = vmatprep.subr.bf16.mxu0 0
      %1313 = vmatpush1.bf16.xpose.msra.mxu0 0
      %1314 = vmatprep.subr.bf16.mxu0 0
      %1315 = vmatpush1.bf16.xpose.msra.mxu0 0
      %1316 = vmatprep.subr.bf16.mxu0 0
      %1317 = vmatpush1.bf16.xpose.msra.mxu0 0
      %1318 = vmatprep.subr.bf16.mxu0 0
      %1319 = vmatpush1.bf16.xpose.msra.mxu0 0
      %1320 = vmatprep.subr.bf16.mxu0 0
      %1321 = vmatpush1.bf16.xpose.msra.mxu0 0
      %1322 = vmatprep.subr.bf16.mxu0 0
      %1323 = vmatpush1.bf16.xpose.msra.mxu0 0
      %1324 = vmatprep.subr.bf16.mxu0 0
      %1325 = vmatpush1.bf16.xpose.msra.mxu0 0
      %1326 = vmatprep.subr.bf16.mxu0 0
      %1327 = vmatpush1.bf16.xpose.msra.mxu0 0
      %1328 = vmatprep.mubr.bf16.mxu0 0
      %1329 = vmatmul.mubr.bf16.gmra.mrb[0].mxu0 %v1291
      %v1330 = vpop.f32.mrb[0].mxu0
      %v1331 = vadd.f32 %v1020, %v1330
      %v1332 = vpop.f32.mrb[0].mxu0
      %v1333 = vpop.f32.mrb[0].mxu0
      %v1334 = vpop.f32.mrb[0].mxu0
      %1335 = vdwg.mxu0
      %v1336 = vsel %vm1114, %v1279, -inf
      %1337 = vmax.xlane.f32.xlu0 %v1336
      %v1338 = vpop.xlane.xlu0 %1337
      %v1339 = vsel %vm1114, %v1331, -inf
      %1340 = vmax.xlane.f32.xlu0 %v1339
      %v1341 = vpop.xlane.xlu0 %1340
      %v1342 = vsub.f32 %v1279, %v1338
      %v1343 = vsub.f32 %v1331, %v1341
      %v1344 = vmul.f32 %v1342, 1.442695
      %v1345 = vpow.pop %v1344
      %v1346 = vmul.f32 %v1343, 1.442695
      %v1347 = vpow.pop %v1346
      %v1348 = vsel %vm1114, %v1345, 0.0
      %1349 = vadd.xlane.f32.xlu0 %v1348
      %v1350 = vpop.xlane.xlu0 %1349
      %v1351 = vsel %vm1114, %v1347, 0.0
      %1352 = vadd.xlane.f32.xlu0 %v1351
      %v1353 = vpop.xlane.xlu0 %1352
      %v1354 = vrcp.pop %v1350
      %v1355 = vrcp.pop %v1353
      %v1356 = vmul.f32 %v1345, %v1354
      %v1357 = vmul.f32 %v1347, %v1355
      %v1358 = vpack.c.bf16 %v1356, %v1356
      %v1359 = vpack.c.bf16 %v1357, %v1357
      %1361 = vrot.lane.b32.xlu0 %v1017, 112
      %v1362 = vpop.permute.xlu0 %1361
      %v1364 = vsel %vm1114, %v1358, 0
      %v1367 = vsel %vm1142, %v1362, 0
      %1369 = vmatprep.subr.bf16.mxu0 0
      %1370 = vmatpush1.bf16.msra.mxu0 %v1367
      %1371 = vmatprep.subr.bf16.mxu0 0
      %1372 = vmatpush1.bf16.msra.mxu0 0
      %1373 = vmatprep.subr.bf16.mxu0 0
      %1374 = vmatpush1.bf16.msra.mxu0 0
      %1375 = vmatprep.subr.bf16.mxu0 0
      %1376 = vmatpush1.bf16.msra.mxu0 0
      %1377 = vmatprep.subr.bf16.mxu0 0
      %1378 = vmatpush1.bf16.msra.mxu0 0
      %1379 = vmatprep.subr.bf16.mxu0 0
      %1380 = vmatpush1.bf16.msra.mxu0 0
      %1381 = vmatprep.subr.bf16.mxu0 0
      %1382 = vmatpush1.bf16.msra.mxu0 0
      %1383 = vmatprep.subr.bf16.mxu0 0
      %1384 = vmatpush1.bf16.msra.mxu0 0
      %1385 = vmatprep.subr.bf16.mxu0 0
      %1386 = vmatpush1.bf16.msra.mxu0 0
      %1387 = vmatprep.subr.bf16.mxu0 0
      %1388 = vmatpush1.bf16.msra.mxu0 0
      %1389 = vmatprep.subr.bf16.mxu0 0
      %1390 = vmatpush1.bf16.msra.mxu0 0
      %1391 = vmatprep.subr.bf16.mxu0 0
      %1392 = vmatpush1.bf16.msra.mxu0 0
      %1393 = vmatprep.subr.bf16.mxu0 0
      %1394 = vmatpush1.bf16.msra.mxu0 0
      %1395 = vmatprep.subr.bf16.mxu0 0
      %1396 = vmatpush1.bf16.msra.mxu0 0
      %1397 = vmatprep.subr.bf16.mxu0 0
      %1398 = vmatpush1.bf16.msra.mxu0 0
      %1399 = vmatprep.subr.bf16.mxu0 0
      %1400 = vmatpush1.bf16.msra.mxu0 0
      %1401 = vmatprep.mubr.bf16.mxu0 0
      %1402 = vmatmul.mubr.bf16.gmra.mrb[0].mxu0 %v1364
      %v1403 = vpop.f32.mrb[0].mxu0
      %v1404 = vadd.f32 0.0, %v1403
      %v1405 = vpop.f32.mrb[0].mxu0
      %v1406 = vpop.f32.mrb[0].mxu0
      %v1407 = vpop.f32.mrb[0].mxu0
      %1408 = vdwg.mxu0
      %1410 = vrot.lane.b32.xlu0 %v1018, 112
      %v1411 = vpop.permute.xlu0 %1410
      %v1413 = vsel %vm1114, %v1359, 0
      %v1416 = vsel %vm1142, %v1411, 0
      %1418 = vmatprep.subr.bf16.mxu0 0
      %1419 = vmatpush1.bf16.msra.mxu0 %v1416
      %1420 = vmatprep.subr.bf16.mxu0 0
      %1421 = vmatpush1.bf16.msra.mxu0 0
      %1422 = vmatprep.subr.bf16.mxu0 0
      %1423 = vmatpush1.bf16.msra.mxu0 0
      %1424 = vmatprep.subr.bf16.mxu0 0
      %1425 = vmatpush1.bf16.msra.mxu0 0
      %1426 = vmatprep.subr.bf16.mxu0 0
      %1427 = vmatpush1.bf16.msra.mxu0 0
      %1428 = vmatprep.subr.bf16.mxu0 0
      %1429 = vmatpush1.bf16.msra.mxu0 0
      %1430 = vmatprep.subr.bf16.mxu0 0
      %1431 = vmatpush1.bf16.msra.mxu0 0
      %1432 = vmatprep.subr.bf16.mxu0 0
      %1433 = vmatpush1.bf16.msra.mxu0 0
      %1434 = vmatprep.subr.bf16.mxu0 0
      %1435 = vmatpush1.bf16.msra.mxu0 0
      %1436 = vmatprep.subr.bf16.mxu0 0
      %1437 = vmatpush1.bf16.msra.mxu0 0
      %1438 = vmatprep.subr.bf16.mxu0 0
      %1439 = vmatpush1.bf16.msra.mxu0 0
      %1440 = vmatprep.subr.bf16.mxu0 0
      %1441 = vmatpush1.bf16.msra.mxu0 0
      %1442 = vmatprep.subr.bf16.mxu0 0
      %1443 = vmatpush1.bf16.msra.mxu0 0
      %1444 = vmatprep.subr.bf16.mxu0 0
      %1445 = vmatpush1.bf16.msra.mxu0 0
      %1446 = vmatprep.subr.bf16.mxu0 0
      %1447 = vmatpush1.bf16.msra.mxu0 0
      %1448 = vmatprep.subr.bf16.mxu0 0
      %1449 = vmatpush1.bf16.msra.mxu0 0
      %1450 = vmatprep.mubr.bf16.mxu0 0
      %1451 = vmatmul.mubr.bf16.gmra.mrb[0].mxu0 %v1413
      %v1452 = vpop.f32.mrb[0].mxu0
      %v1453 = vadd.f32 0.0, %v1452
      %v1454 = vpop.f32.mrb[0].mxu0
      %v1455 = vpop.f32.mrb[0].mxu0
      %v1456 = vpop.f32.mrb[0].mxu0
      %1457 = vdwg.mxu0
      %1460 = vrot.lane.b32.xlu0 %v1404, 16
      %v1461 = vpop.permute.xlu0 %1460
      %1462 = vrot.lane.b32.xlu0 %v1453, 16
      %v1463 = vpop.permute.xlu0 %1462
      %v1466 = vsel %vm1021, %v1181, %v1461
      %v1467 = vsel %vm1021, %v1227, %v1463
      %v1468 = vpack.c.bf16 %v1467, %v1466
      %v1469 = vld [vmem:[%s678] sm:$0xf]
      %v1470 = vld [vmem:[%s678 + $0x4] sm:$0xf]
      %v1471 = vld [vmem:[%s678 + $0x8] sm:$0xf]
      %v1472 = vld [vmem:[%s678 + $0xc] sm:$0xf]
      %v1473 = vld [vmem:[%s681] sm:$0x1]
      %v1475 = vlaneseq
      %v1476 = vshrl.u32 %v1475, 7
      %v1477 = vsub.s32 0, %v1476
      %v1478 = vrot.slane %v1473, %v1477
      %v1484 = vunpack.c.l.b16 %v1469
      %v1485 = vunpack.c.l.b16 %v1470
      %v1486 = vunpack.c.l.b16 %v1471
      %v1487 = vunpack.c.l.b16 %v1472
      %v1488 = vpack.c.b16 %v1485, %v1484
      %v1489 = vpack.c.b16 %v1487, %v1486
      %v1493 = vsel %vm850, %v1468, 0
      %1495 = vmatprep.subr.bf16.mxu0 0
      %1496 = vmatpush1.bf16.msra.mxu0 %v1488
      %1497 = vmatprep.subr.bf16.mxu0 0
      %1498 = vmatpush1.bf16.msra.mxu0 %v1489
      %1499 = vmatprep.subr.bf16.mxu0 0
      %1500 = vmatpush1.bf16.msra.mxu0 0
      %1501 = vmatprep.subr.bf16.mxu0 0
      %1502 = vmatpush1.bf16.msra.mxu0 0
      %1503 = vmatprep.subr.bf16.mxu0 0
      %1504 = vmatpush1.bf16.msra.mxu0 0
      %1505 = vmatprep.subr.bf16.mxu0 0
      %1506 = vmatpush1.bf16.msra.mxu0 0
      %1507 = vmatprep.subr.bf16.mxu0 0
      %1508 = vmatpush1.bf16.msra.mxu0 0
      %1509 = vmatprep.subr.bf16.mxu0 0
      %1510 = vmatpush1.bf16.msra.mxu0 0
      %1511 = vmatprep.subr.bf16.mxu0 0
      %1512 = vmatpush1.bf16.msra.mxu0 0
      %1513 = vmatprep.subr.bf16.mxu0 0
      %1514 = vmatpush1.bf16.msra.mxu0 0
      %1515 = vmatprep.subr.bf16.mxu0 0
      %1516 = vmatpush1.bf16.msra.mxu0 0
      %1517 = vmatprep.subr.bf16.mxu0 0
      %1518 = vmatpush1.bf16.msra.mxu0 0
      %1519 = vmatprep.subr.bf16.mxu0 0
      %1520 = vmatpush1.bf16.msra.mxu0 0
      %1521 = vmatprep.subr.bf16.mxu0 0
      %1522 = vmatpush1.bf16.msra.mxu0 0
      %1523 = vmatprep.subr.bf16.mxu0 0
      %1524 = vmatpush1.bf16.msra.mxu0 0
      %1525 = vmatprep.subr.bf16.mxu0 0
      %1526 = vmatpush1.bf16.msra.mxu0 0
      %1527 = vmatprep.mubr.bf16.mxu0 0
      %1528 = vmatmul.mubr.bf16.gmra.mrb[0].mxu0 %v1493
      %v1529 = vpop.f32.mrb[0].mxu0
      %v1530 = vadd.f32 %v1478, %v1529
      %v1531 = vpop.f32.mrb[0].mxu0
      %v1532 = vpop.f32.mrb[0].mxu0
      %v1533 = vadd.f32 %v1478, %v1532
      %v1534 = vpop.f32.mrb[0].mxu0
      %1535 = vdwg.mxu0
      %v1536 = vld [vmem:[%s685] sm:$0x3]
      %v1537 = vadd.f32 %v811, %v1530
      %v1538 = vadd.f32 %v812, %v1533
      %v1539 = vsel %vm850, %v1537, 0.0
      %1540 = vadd.xlane.f32.xlu0 %v1539
      %v1541 = vpop.xlane.xlu0 %1540
      %v1542 = vsel %vm850, %v1538, 0.0
      %1543 = vadd.xlane.f32.xlu0 %v1542
      %v1544 = vpop.xlane.xlu0 %1543
      %v1545 = vrcp.pop 32.0
      %v1546 = vmul.f32 %v1541, %v1545
      %v1547 = vmul.f32 %v1544, %v1545
      %v1548 = vsub.f32 %v1537, %v1546
      %v1549 = vsub.f32 %v1538, %v1547
      %v1550 = vmul.f32 %v1548, %v1548
      %v1551 = vmul.f32 %v1549, %v1549
      %v1552 = vsel %vm850, %v1550, 0.0
      %1553 = vadd.xlane.f32.xlu0 %v1552
      %v1554 = vpop.xlane.xlu0 %1553
      %v1555 = vsel %vm850, %v1551, 0.0
      %1556 = vadd.xlane.f32.xlu0 %v1555
      %v1557 = vpop.xlane.xlu0 %1556
      %v1558 = vmul.f32 %v1554, %v1545
      %v1559 = vmul.f32 %v1557, %v1545
      %v1560 = vadd.f32 %v1558, 1e-12
      %v1561 = vadd.f32 %v1559, 1e-12
      %v1562 = vrsqrt.pop %v1560
      %v1563 = vrsqrt.pop %v1561
      %v1564 = vmul.f32 %v1548, %v1562
      %v1565 = vmul.f32 %v1549, %v1563
      %v1566 = vlaneseq
      %v1567 = vshrl.u32 %v1566, 7
      %v1568 = vsub.s32 0, %v1567
      %v1569 = vrot.slane %v1536, %v1568
      %v1570 = vmul.f32 %v1564, %v1569
      %v1571 = vmul.f32 %v1565, %v1569
      %v1572 = vlaneseq
      %v1573 = vshrl.u32 %v1572, 7
      %v1574 = vsub.s32 1, %v1573
      %v1575 = vrot.slane %v1536, %v1574
      %v1576 = vadd.f32 %v1570, %v1575
      %v1577 = vadd.f32 %v1571, %v1575
      %v1578 = vpack.c.bf16 %v1577, %v1576
      %v1579 = vld [vmem:[%s690] sm:$0xf]
      %v1580 = vld [vmem:[%s690 + $0x4] sm:$0xf]
      %v1581 = vld [vmem:[%s690 + $0x8] sm:$0xf]
      %v1582 = vld [vmem:[%s690 + $0xc] sm:$0xf]
      %v1583 = vld [vmem:[%s693] sm:$0x1]
      %v1585 = vlaneseq
      %v1586 = vshrl.u32 %v1585, 7
      %v1587 = vsub.s32 0, %v1586
      %v1588 = vrot.slane %v1583, %v1587
      %v1594 = vunpack.c.l.b16 %v1579
      %v1595 = vunpack.c.l.b16 %v1580
      %v1596 = vunpack.c.l.b16 %v1581
      %v1597 = vunpack.c.l.b16 %v1582
      %v1598 = vpack.c.b16 %v1595, %v1594
      %v1599 = vpack.c.b16 %v1597, %v1596
      %v1603 = vsel %vm850, %v1578, 0
      %1605 = vmatprep.subr.bf16.mxu0 0
      %1606 = vmatpush1.bf16.msra.mxu0 %v1598
      %1607 = vmatprep.subr.bf16.mxu0 0
      %1608 = vmatpush1.bf16.msra.mxu0 %v1599
      %1609 = vmatprep.subr.bf16.mxu0 0
      %1610 = vmatpush1.bf16.msra.mxu0 0
      %1611 = vmatprep.subr.bf16.mxu0 0
      %1612 = vmatpush1.bf16.msra.mxu0 0
      %1613 = vmatprep.subr.bf16.mxu0 0
      %1614 = vmatpush1.bf16.msra.mxu0 0
      %1615 = vmatprep.subr.bf16.mxu0 0
      %1616 = vmatpush1.bf16.msra.mxu0 0
      %1617 = vmatprep.subr.bf16.mxu0 0
      %1618 = vmatpush1.bf16.msra.mxu0 0
      %1619 = vmatprep.subr.bf16.mxu0 0
      %1620 = vmatpush1.bf16.msra.mxu0 0
      %1621 = vmatprep.subr.bf16.mxu0 0
      %1622 = vmatpush1.bf16.msra.mxu0 0
      %1623 = vmatprep.subr.bf16.mxu0 0
      %1624 = vmatpush1.bf16.msra.mxu0 0
      %1625 = vmatprep.subr.bf16.mxu0 0
      %1626 = vmatpush1.bf16.msra.mxu0 0
      %1627 = vmatprep.subr.bf16.mxu0 0
      %1628 = vmatpush1.bf16.msra.mxu0 0
      %1629 = vmatprep.subr.bf16.mxu0 0
      %1630 = vmatpush1.bf16.msra.mxu0 0
      %1631 = vmatprep.subr.bf16.mxu0 0
      %1632 = vmatpush1.bf16.msra.mxu0 0
      %1633 = vmatprep.subr.bf16.mxu0 0
      %1634 = vmatpush1.bf16.msra.mxu0 0
      %1635 = vmatprep.subr.bf16.mxu0 0
      %1636 = vmatpush1.bf16.msra.mxu0 0
      %1637 = vmatprep.mubr.bf16.mxu0 0
      %1638 = vmatmul.mubr.bf16.gmra.mrb[0].mxu0 %v1603
      %v1639 = vpop.f32.mrb[0].mxu0
      %v1640 = vadd.f32 %v1588, %v1639
      %v1641 = vpop.f32.mrb[0].mxu0
      %v1642 = vpop.f32.mrb[0].mxu0
      %v1643 = vadd.f32 %v1588, %v1642
      %v1644 = vpop.f32.mrb[0].mxu0
      %1645 = vdwg.mxu0
      %v1646 = vmax.f32 %v1640, 0.0
      %v1647 = vmax.f32 %v1643, 0.0
      %v1648 = vpack.c.bf16 %v1647, %v1646
      %v1649 = vld [vmem:[%s698] sm:$0xf]
      %v1650 = vld [vmem:[%s698 + $0x4] sm:$0xf]
      %v1651 = vld [vmem:[%s698 + $0x8] sm:$0xf]
      %v1652 = vld [vmem:[%s698 + $0xc] sm:$0xf]
      %v1653 = vld [vmem:[%s698 + $0x10] sm:$0xf]
      %v1654 = vld [vmem:[%s698 + $0x14] sm:$0xf]
      %v1655 = vld [vmem:[%s698 + $0x18] sm:$0xf]
      %v1656 = vld [vmem:[%s698 + $0x1c] sm:$0xf]
      %v1657 = vld [vmem:[%s701] sm:$0x1]
      %v1659 = vlaneseq
      %v1660 = vshrl.u32 %v1659, 7
      %v1661 = vsub.s32 0, %v1660
      %v1662 = vrot.slane %v1657, %v1661
      %v1672 = vunpack.c.l.b16 %v1649
      %v1673 = vunpack.c.l.b16 %v1650
      %v1674 = vunpack.c.l.b16 %v1651
      %v1675 = vunpack.c.l.b16 %v1652
      %v1676 = vunpack.c.l.b16 %v1653
      %v1677 = vunpack.c.l.b16 %v1654
      %v1678 = vunpack.c.l.b16 %v1655
      %v1679 = vunpack.c.l.b16 %v1656
      %v1680 = vpack.c.b16 %v1673, %v1672
      %v1681 = vpack.c.b16 %v1675, %v1674
      %v1682 = vpack.c.b16 %v1677, %v1676
      %v1683 = vpack.c.b16 %v1679, %v1678
      %vm1688 = vcmask 523264
      %v1690 = vsel %vm1688, %v1648, 0
      %1692 = vmatprep.subr.bf16.mxu0 0
      %1693 = vmatpush1.bf16.msra.mxu0 %v1680
      %1694 = vmatprep.subr.bf16.mxu0 0
      %1695 = vmatpush1.bf16.msra.mxu0 %v1681
      %1696 = vmatprep.subr.bf16.mxu0 0
      %1697 = vmatpush1.bf16.msra.mxu0 %v1682
      %1698 = vmatprep.subr.bf16.mxu0 0
      %1699 = vmatpush1.bf16.msra.mxu0 %v1683
      %1700 = vmatprep.subr.bf16.mxu0 0
      %1701 = vmatpush1.bf16.msra.mxu0 0
      %1702 = vmatprep.subr.bf16.mxu0 0
      %1703 = vmatpush1.bf16.msra.mxu0 0
      %1704 = vmatprep.subr.bf16.mxu0 0
      %1705 = vmatpush1.bf16.msra.mxu0 0
      %1706 = vmatprep.subr.bf16.mxu0 0
      %1707 = vmatpush1.bf16.msra.mxu0 0
      %1708 = vmatprep.subr.bf16.mxu0 0
      %1709 = vmatpush1.bf16.msra.mxu0 0
      %1710 = vmatprep.subr.bf16.mxu0 0
      %1711 = vmatpush1.bf16.msra.mxu0 0
      %1712 = vmatprep.subr.bf16.mxu0 0
      %1713 = vmatpush1.bf16.msra.mxu0 0
      %1714 = vmatprep.subr.bf16.mxu0 0
      %1715 = vmatpush1.bf16.msra.mxu0 0
      %1716 = vmatprep.subr.bf16.mxu0 0
      %1717 = vmatpush1.bf16.msra.mxu0 0
      %1718 = vmatprep.subr.bf16.mxu0 0
      %1719 = vmatpush1.bf16.msra.mxu0 0
      %1720 = vmatprep.subr.bf16.mxu0 0
      %1721 = vmatpush1.bf16.msra.mxu0 0
      %1722 = vmatprep.subr.bf16.mxu0 0
      %1723 = vmatpush1.bf16.msra.mxu0 0
      %1724 = vmatprep.mubr.bf16.mxu0 0
      %1725 = vmatmul.mubr.bf16.gmra.mrb[0].mxu0 %v1690
      %v1726 = vpop.f32.mrb[0].mxu0
      %v1727 = vadd.f32 %v1662, %v1726
      %v1728 = vpop.f32.mrb[0].mxu0
      %v1729 = vpop.f32.mrb[0].mxu0
      %v1730 = vadd.f32 %v1662, %v1729
      %v1731 = vpop.f32.mrb[0].mxu0
      %1732 = vdwg.mxu0
      %v1733 = vld [vmem:[%s705] sm:$0x3]
      %v1734 = vadd.f32 %v1576, %v1727
      %v1735 = vadd.f32 %v1577, %v1730
      %v1736 = vsel %vm850, %v1734, 0.0
      %1737 = vadd.xlane.f32.xlu0 %v1736
      %v1738 = vpop.xlane.xlu0 %1737
      %v1739 = vsel %vm850, %v1735, 0.0
      %1740 = vadd.xlane.f32.xlu0 %v1739
      %v1741 = vpop.xlane.xlu0 %1740
      %v1742 = vmul.f32 %v1738, %v1545
      %v1743 = vmul.f32 %v1741, %v1545
      %v1744 = vsub.f32 %v1734, %v1742
      %v1745 = vsub.f32 %v1735, %v1743
      %v1746 = vmul.f32 %v1744, %v1744
      %v1747 = vmul.f32 %v1745, %v1745
      %v1748 = vsel %vm850, %v1746, 0.0
      %1749 = vadd.xlane.f32.xlu0 %v1748
      %v1750 = vpop.xlane.xlu0 %1749
      %v1751 = vsel %vm850, %v1747, 0.0
      %1752 = vadd.xlane.f32.xlu0 %v1751
      %v1753 = vpop.xlane.xlu0 %1752
      %v1754 = vmul.f32 %v1750, %v1545
      %v1755 = vmul.f32 %v1753, %v1545
      %v1756 = vadd.f32 %v1754, 1e-12
      %v1757 = vadd.f32 %v1755, 1e-12
      %v1758 = vrsqrt.pop %v1756
      %v1759 = vrsqrt.pop %v1757
      %v1760 = vmul.f32 %v1744, %v1758
      %v1761 = vmul.f32 %v1745, %v1759
      %v1762 = vlaneseq
      %v1763 = vshrl.u32 %v1762, 7
      %v1764 = vsub.s32 0, %v1763
      %v1765 = vrot.slane %v1733, %v1764
      %v1766 = vmul.f32 %v1760, %v1765
      %v1767 = vmul.f32 %v1761, %v1765
      %v1768 = vlaneseq
      %v1769 = vshrl.u32 %v1768, 7
      %v1770 = vsub.s32 1, %v1769
      %v1771 = vrot.slane %v1733, %v1770
      %v1772 = vadd.f32 %v1766, %v1771
      %v1773 = vadd.f32 %v1767, %v1771
      %1774 = vst.msk [vmem:[#allocation2] sm:$0xff] %vm850, %v1772
      %1775 = vst.msk [vmem:[#allocation2 + $0x8] sm:$0xff] %vm850, %v1773
      %p1776 = scmp.eq.s32.totalorder %s30, 1
      // Predicated region
      $region81: #{time_model_forward.3} parent=75 // pred_check
        %p1777 = pneg %p1776
      $region82: #{time_model_forward.3} parent=75 // pred_check_branch
        %1779 = sbr.rel (%p1777) target = $region84
      $region83: #{time_model_forward.3} parent=75 // pred_region
        %1780 = vst.msk [vmem:[%s710] sm:$0xff] %vm850, %v1772
        %1781 = vst.msk [vmem:[%s710 + $0x8] sm:$0xff] %vm850, %v1773
      $region84: #{time_model_forward.3} parent=75 // pred_fallthru
        _
      %s1782 = smul.u32 2, %s29
      %p1783 = scmp.lt.s32.totalorder %s1782, 1
      %s1784 = scalar_select %p1783, %s1782, 1
      %s1785 = smul.addr %s1784, 8
      %s1786 = scalar_lea.vmem %s14, %s1785
      // Predicated region
      $region85: #{time_model_forward.3} parent=75 // pred_check
        %p1787 = pneg %p419
      $region86: #{time_model_forward.3} parent=75 // pred_check_branch
        %1789 = sbr.rel (%p1787) target = $region88
      $region87: #{time_model_forward.3} parent=75 // pred_region
        %s1790 = smul.u32 2, %s29
      $region88: #{time_model_forward.3} parent=75 // pred_fallthru
        _
      // Predicated region
      $region89: #{time_model_forward.3} parent=75 // pred_check
        %p1791 = pneg %p419
      $region90: #{time_model_forward.3} parent=75 // pred_check_branch
        %1793 = sbr.rel (%p1791) target = $region92
      $region91: #{time_model_forward.3} parent=75 // pred_region
        %s1794 = smul.u32 2, %s29
        %p1795 = scmp.lt.s32.totalorder %s1794, 1
        %s1796 = scalar_select %p1795, %s1794, 1
        %s1797 = smul.addr %s1796, 8
        %s1798 = scalar_lea.vmem %s14, %s1797
      $region92: #{time_model_forward.3} parent=75 // pred_fallthru
        _
    $region76: #{time_model_forward.3} parent=5 // pred_fallthru
      _
    %p1799 = scmp.le.s32.totalorder 2, %s20
    // Predicated region
    $region93: #{time_model_forward.3} parent=5 // pred_check
      %p1800 = pneg %p1799
    $region94: #{time_model_forward.3} parent=5 // pred_check_branch
      %1802 = sbr.rel (%p1800) target = $region96
    $region95: #{time_model_forward.3} parent=5 // pred_region
      %s1803 = ssub.s32 %s20, 2
    $region96: #{time_model_forward.3} parent=5 // pred_fallthru
      _
  $region6: #{time_model_forward.3} parent=0 // loop_footer
    %s24 = sadd.s32 1, %s20
  $region7: #{time_model_forward.3} parent=0 // loop_footer_branch
    %19 = sbr.rel target = $region3
  $region8: #{time_model_forward.3} parent=0 // loop_exit
    _

</llo_original>
